<compile_context>
chip_gen: v7x
topology: tpu7x:2x2x1
jax: 0.10.0
libtpu: 0.0.40
codegen_flags: <defaults>
</compile_context>

<pallas_src>
import functools

import numpy as np
import jax
import jax.numpy as jnp
from jax.experimental import pallas as pl
from jax.experimental.pallas import tpu as pltpu


def _round_up(x, m):
    return (x + m - 1) // m * m


def _layernorm(x, gamma, beta, dmask, d_true, eps=1e-5):
    """Biased-variance LayerNorm over the last dim, ignoring zero padded lanes.

    Padded columns of `x` are exactly zero, so sums over the padded width equal sums
    over the true width; `dmask` zeroes the (x - mu) contribution of padded columns
    before the variance sum.  Padded gamma/beta are zero, so padded outputs stay zero.
    """
    inv_d = 1.0 / float(d_true)
    mu = jnp.sum(x, axis=-1, keepdims=True) * inv_d
    xc = x - mu
    if dmask is not None:
        xc = xc * dmask
    var = jnp.sum(xc * xc, axis=-1, keepdims=True) * inv_d
    return xc * jax.lax.rsqrt(var + eps) * gamma + beta


def _transformer_block_kernel(
    x_ref,
    wq_ref, bq_ref, wk_ref, bk_ref, wv_ref, bv_ref, wo_ref, bo_ref,
    w1_ref, b1_ref, w2_ref, b2_ref,
    g1_ref, be1_ref, g2_ref, be2_ref,
    o_ref,
    k_s, v_s,
    *, num_heads, dhp, tq, s_pad, s_true, dp, d_true,
):
    qi = pl.program_id(1)
    H = num_heads

    # ---- K / V for the whole sequence, once per batch element (flash-style) ----
    @pl.when(qi == 0)
    def _():
        xb_full = x_ref[...].astype(jnp.bfloat16)                       # (S_pad, Dp)
        k = jnp.dot(xb_full, wk_ref[...],
                    preferred_element_type=jnp.float32) + bk_ref[...]   # (S_pad, H*dhp)
        v = jnp.dot(xb_full, wv_ref[...],
                    preferred_element_type=jnp.float32) + bv_ref[...]
        # Head blocks are 128-lane aligned -> these slices/stores avoid relayouts.
        for h in range(H):
            sl = slice(h * dhp, (h + 1) * dhp)
            k_s[h] = k[:, sl].astype(jnp.bfloat16)                      # (S_pad, dhp)
            v_s[h] = v[:, sl].astype(jnp.bfloat16)

    # ---- Q row tile ----
    row0 = pl.multiple_of(qi * tq, tq)
    x_rows = x_ref[pl.ds(row0, tq), :]                                  # (TQ, Dp) f32
    xb = x_rows.astype(jnp.bfloat16)
    # 1/sqrt(depth) is already folded into wq/bq on the host.
    q = jnp.dot(xb, wq_ref[...], preferred_element_type=jnp.float32) + bq_ref[...]
    q_h = jnp.stack(                                                    # (H, TQ, dhp)
        [q[:, h * dhp:(h + 1) * dhp] for h in range(H)], axis=0
    ).astype(jnp.bfloat16)

    # ---- attention: all heads batched on the MXU ----
    s = jnp.einsum("hqd,hkd->hqk", q_h, k_s[...],
                   preferred_element_type=jnp.float32)                  # (H, TQ, S_pad)
    if s_pad > s_true:  # mask padded key rows (their K/V are just the biases)
        key_ids = jax.lax.broadcasted_iota(jnp.int32, (1, 1, s_pad), 2)
        s = jnp.where(key_ids < s_true, s, -1e30)
    s = s - jnp.max(s, axis=-1, keepdims=True)
    p = jnp.exp(s)
    p = p * pl.reciprocal(jnp.sum(p, axis=-1, keepdims=True), approx=True)
    ctx = jnp.einsum("hqk,hkd->hqd", p.astype(jnp.bfloat16), v_s[...],
                     preferred_element_type=jnp.float32)                # (H, TQ, dhp)
    # Merge heads back to (TQ, H*dhp); 128-aligned lane concat => no relayout.
    ctx_m = jnp.concatenate([ctx[h] for h in range(H)], axis=-1).astype(jnp.bfloat16)

    attn = jnp.dot(ctx_m, wo_ref[...],
                   preferred_element_type=jnp.float32) + bo_ref[...]    # (TQ, Dp)

    # ---- residual + LayerNorm 1 (dropout = identity in eval mode) ----
    if dp > d_true:
        col = jax.lax.broadcasted_iota(jnp.int32, (1, dp), 1)
        dmask = (col < d_true).astype(jnp.float32)
    else:
        dmask = None
    y1 = _layernorm(x_rows + attn, g1_ref[...], be1_ref[...], dmask, d_true)

    # ---- position-wise feed-forward ----
    h1 = jnp.maximum(
        jnp.dot(y1.astype(jnp.bfloat16), w1_ref[...],
                preferred_element_type=jnp.float32) + b1_ref[...], 0.0)
    ffn = jnp.dot(h1.astype(jnp.bfloat16), w2_ref[...],
                  preferred_element_type=jnp.float32) + b2_ref[...]

    # ---- residual + LayerNorm 2 ----
    o_ref[...] = _layernorm(y1 + ffn, g2_ref[...], be2_ref[...],
                            dmask, d_true).astype(o_ref.dtype)


def transformer_block(x, params, *, num_heads):
    """x: (B, S, D) float32.  params: dict of (in, out) weights and 1-D biases/LN params."""
    B, S, D = x.shape
    assert D % num_heads == 0, "d_model must be divisible by num_heads"
    depth = D // num_heads
    d_ff = params["w1"].shape[1]

    # ---- padded / tiled geometry (lane-dense everywhere) ----
    dp = _round_up(D, 128)
    fp = _round_up(d_ff, 128)
    dhp = _round_up(depth, 128)
    hd = num_heads * dhp
    if S <= 128:
        s_pad = _round_up(S, 8)
        tq = s_pad
    else:
        tq = 128
        s_pad = _round_up(S, tq)
    n_q = s_pad // tq

    f32, bf16 = jnp.float32, jnp.bfloat16
    scale = 1.0 / float(np.sqrt(depth))

    def pad_to(a, shape):
        out = jnp.zeros(shape, a.dtype)
        return out.at[tuple(slice(0, n) for n in a.shape)].set(a)

    # Q/K/V weights: (D, D) -> head-blocked (Dp, H*dhp); scale folded into Q.
    def head_out(w, b, s=1.0):
        w3 = pad_to((w * s).reshape(D, num_heads, depth), (dp, num_heads, dhp))
        b3 = pad_to((b * s).reshape(num_heads, depth), (num_heads, dhp))
        return w3.reshape(dp, hd).astype(bf16), b3.reshape(1, hd).astype(f32)

    wq, bq = head_out(params["wq"], params["bq"], scale)
    wk, bk = head_out(params["wk"], params["bk"])
    wv, bv = head_out(params["wv"], params["bv"])

    wo = pad_to(params["wo"].reshape(num_heads, depth, D),
                (num_heads, dhp, dp)).reshape(hd, dp).astype(bf16)
    bo = pad_to(params["bo"].reshape(1, D), (1, dp)).astype(f32)

    w1 = pad_to(params["w1"], (dp, fp)).astype(bf16)
    b1 = pad_to(params["b1"].reshape(1, d_ff), (1, fp)).astype(f32)
    w2 = pad_to(params["w2"], (fp, dp)).astype(bf16)
    b2 = pad_to(params["b2"].reshape(1, D), (1, dp)).astype(f32)

    g1 = pad_to(params["g1"].reshape(1, D), (1, dp)).astype(f32)
    be1 = pad_to(params["be1"].reshape(1, D), (1, dp)).astype(f32)
    g2 = pad_to(params["g2"].reshape(1, D), (1, dp)).astype(f32)
    be2 = pad_to(params["be2"].reshape(1, D), (1, dp)).astype(f32)

    xp = jnp.zeros((B, s_pad, dp), x.dtype).at[:, :S, :D].set(x)

    # ---- VMEM budget (resident weights + I/O double buffers + scratch + activations) ----
    weight_bytes = (3 * dp * hd + hd * dp + dp * fp + fp * dp) * 2 \
        + (3 * hd + fp + 8 * dp) * 4
    io_bytes = (s_pad * dp + tq * dp) * 4
    scratch_bytes = 2 * num_heads * s_pad * dhp * 2
    act_bytes = 3 * num_heads * tq * s_pad * 4 + 4 * tq * hd * 4 \
        + 2 * tq * fp * 4 + 8 * tq * dp * 4
    est = 2 * (weight_bytes + io_bytes) + scratch_bytes + act_bytes
    try:  # cap the request at the physical VMEM of the chip we are on (v7x: 64 MiB/TC)
        phys_vmem = int(pltpu.get_tpu_info().vmem_capacity_bytes)
    except Exception:
        phys_vmem = 64 * 1024 * 1024
    # TODO(synk): on v7x (64 MiB VMEM) very large d_ff configs should stream w1/w2.
    vmem_limit = int(min(max(2 * est, 32 * 1024 * 1024), phys_vmem - 2 * 1024 * 1024))

    def rep(shape):
        ndim = len(shape)
        return pl.BlockSpec(shape, lambda b, q: (0,) * ndim)

    in_specs = [
        pl.BlockSpec((None, s_pad, dp), lambda b, q: (b, 0, 0)),  # x (full sequence)
        rep((dp, hd)), rep((1, hd)),                              # wq, bq
        rep((dp, hd)), rep((1, hd)),                              # wk, bk
        rep((dp, hd)), rep((1, hd)),                              # wv, bv
        rep((hd, dp)), rep((1, dp)),                              # wo, bo
        rep((dp, fp)), rep((1, fp)),                              # w1, b1
        rep((fp, dp)), rep((1, dp)),                              # w2, b2
        rep((1, dp)), rep((1, dp)), rep((1, dp)), rep((1, dp)),   # ln1/ln2 gamma, beta
    ]

    kernel = functools.partial(
        _transformer_block_kernel,
        num_heads=num_heads, dhp=dhp, tq=tq, s_pad=s_pad, s_true=S,
        dp=dp, d_true=D,
    )

    out = pl.pallas_call(
        kernel,
        out_shape=jax.ShapeDtypeStruct((B, s_pad, dp), x.dtype),
        grid_spec=pltpu.PrefetchScalarGridSpec(
            num_scalar_prefetch=0,
            grid=(B, n_q),
            in_specs=in_specs,
            out_specs=pl.BlockSpec((None, tq, dp), lambda b, q: (b, q, 0)),
            scratch_shapes=[
                pltpu.VMEM((num_heads, s_pad, dhp), jnp.bfloat16),  # K (head-major)
                pltpu.VMEM((num_heads, s_pad, dhp), jnp.bfloat16),  # V (head-major)
            ],
        ),
        compiler_params=pltpu.CompilerParams(
            dimension_semantics=("parallel", "arbitrary"),
            vmem_limit_bytes=vmem_limit,
        ),
    )(xp, wq, bq, wk, bk, wv, bv, wo, bo, w1, b1, w2, b2, g1, be1, g2, be2)

    return out[:, :S, :D]


def _reference(x, p, num_heads):
    """Pure-JAX f32 reference mirroring the PyTorch forward (eval mode)."""
    B, S, D = x.shape
    depth = D // num_heads

    def ln(z, g, b, eps=1e-5):
        mu = jnp.mean(z, -1, keepdims=True)
        var = jnp.mean((z - mu) ** 2, -1, keepdims=True)
        return (z - mu) / jnp.sqrt(var + eps) * g + b

    q = x @ p["wq"] + p["bq"]
    k = x @ p["wk"] + p["bk"]
    v = x @ p["wv"] + p["bv"]

    def split(t):
        return t.reshape(B, S, num_heads, depth).transpose(0, 2, 1, 3)

    qh, kh, vh = split(q), split(k), split(v)
    scores = jnp.einsum("bhqd,bhkd->bhqk", qh, kh) / np.sqrt(depth)
    w = jax.nn.softmax(scores, axis=-1)
    ctx = jnp.einsum("bhqk,bhkd->bhqd", w, vh).transpose(0, 2, 1, 3).reshape(B, S, D)
    attn = ctx @ p["wo"] + p["bo"]
    y1 = ln(x + attn, p["g1"], p["be1"])
    ffn = jnp.maximum(y1 @ p["w1"] + p["b1"], 0.0) @ p["w2"] + p["b2"]
    return ln(y1 + ffn, p["g2"], p["be2"])


if __name__ == "__main__":
    B, S, D = 2, 8, 32
    num_heads = 4
    d_ff = 64

    key = jax.random.PRNGKey(0)
    keys = jax.random.split(key, 20)

    def w(k, shape, scale=0.05):
        return (scale * jax.random.normal(k, shape)).astype(jnp.float32)

    # Weights are stored pre-transposed relative to torch.nn.Linear: (in, out), so y = x @ W + b.
    params = {
        "wq": w(keys[0], (D, D)), "bq": w(keys[1], (D,)),
        "wk": w(keys[2], (D, D)), "bk": w(keys[3], (D,)),
        "wv": w(keys[4], (D, D)), "bv": w(keys[5], (D,)),
        "wo": w(keys[6], (D, D)), "bo": w(keys[7], (D,)),
        "w1": w(keys[8], (D, d_ff)), "b1": w(keys[9], (d_ff,)),
        "w2": w(keys[10], (d_ff, D)), "b2": w(keys[11], (D,)),
        "g1": (1.0 + 0.1 * jax.random.normal(keys[13], (D,))).astype(jnp.float32),
        "be1": (0.1 * jax.random.normal(keys[14], (D,))).astype(jnp.float32),
        "g2": (1.0 + 0.1 * jax.random.normal(keys[15], (D,))).astype(jnp.float32),
        "be2": (0.1 * jax.random.normal(keys[16], (D,))).astype(jnp.float32),
    }

    x = jax.random.normal(keys[12], (B, S, D), dtype=jnp.float32)

    out = jax.block_until_ready(transformer_block(x, params, num_heads=num_heads))
    ref = _reference(x, params, num_heads)

    # bf16 MXU operands (f32 accumulation) => compare against the f32 reference
    # with a tolerance that covers bf16 rounding but still catches structural bugs.
    np.testing.assert_allclose(np.asarray(out), np.asarray(ref), atol=3e-2, rtol=3e-2)

    print("KERNEL_OK")
</pallas_src>

<mosaic_0001>
module attributes {stable_mosaic.version = 11 : i64} {
  func.func @_transformer_block_kernel(%arg0: i32, %arg1: i32, %arg2: memref<1x8x128xf32, #tpu.memory_space<vmem>>, %arg3: memref<128x512xbf16, #tpu.memory_space<vmem>>, %arg4: memref<1x512xf32, #tpu.memory_space<vmem>>, %arg5: memref<128x512xbf16, #tpu.memory_space<vmem>>, %arg6: memref<1x512xf32, #tpu.memory_space<vmem>>, %arg7: memref<128x512xbf16, #tpu.memory_space<vmem>>, %arg8: memref<1x512xf32, #tpu.memory_space<vmem>>, %arg9: memref<512x128xbf16, #tpu.memory_space<vmem>>, %arg10: memref<1x128xf32, #tpu.memory_space<vmem>>, %arg11: memref<128x128xbf16, #tpu.memory_space<vmem>>, %arg12: memref<1x128xf32, #tpu.memory_space<vmem>>, %arg13: memref<128x128xbf16, #tpu.memory_space<vmem>>, %arg14: memref<1x128xf32, #tpu.memory_space<vmem>>, %arg15: memref<1x128xf32, #tpu.memory_space<vmem>>, %arg16: memref<1x128xf32, #tpu.memory_space<vmem>>, %arg17: memref<1x128xf32, #tpu.memory_space<vmem>>, %arg18: memref<1x128xf32, #tpu.memory_space<vmem>>, %arg19: memref<1x8x128xf32, #tpu.memory_space<vmem>>, %arg20: memref<4x8x128xbf16, #tpu.memory_space<vmem>>, %arg21: memref<4x8x128xbf16, #tpu.memory_space<vmem>>) attributes {dimension_semantics = [#tpu.dimension_semantics<parallel>, #tpu.dimension_semantics<arbitrary>], iteration_bounds = array<i64: 2, 1>, scalar_prefetch = 0 : i64, scratch_operands = 2 : i64, tpu.core_type = #tpu.core_type<tc>, window_params = [{transform_indices = @transform_0, window_bounds = array<i64: 1, 8, 128>}, {pipeline_mode = #tpu.pipeline_mode<synchronous>, transform_indices = @transform_1, window_bounds = array<i64: 128, 512>}, {pipeline_mode = #tpu.pipeline_mode<synchronous>, transform_indices = @transform_2, window_bounds = array<i64: 1, 512>}, {pipeline_mode = #tpu.pipeline_mode<synchronous>, transform_indices = @transform_3, window_bounds = array<i64: 128, 512>}, {pipeline_mode = #tpu.pipeline_mode<synchronous>, transform_indices = @transform_4, window_bounds = array<i64: 1, 512>}, {pipeline_mode = #tpu.pipeline_mode<synchronous>, transform_indices = @transform_5, window_bounds = array<i64: 128, 512>}, {pipeline_mode = #tpu.pipeline_mode<synchronous>, transform_indices = @transform_6, window_bounds = array<i64: 1, 512>}, {pipeline_mode = #tpu.pipeline_mode<synchronous>, transform_indices = @transform_7, window_bounds = array<i64: 512, 128>}, {pipeline_mode = #tpu.pipeline_mode<synchronous>, transform_indices = @transform_8, window_bounds = array<i64: 1, 128>}, {pipeline_mode = #tpu.pipeline_mode<synchronous>, transform_indices = @transform_9, window_bounds = array<i64: 128, 128>}, {pipeline_mode = #tpu.pipeline_mode<synchronous>, transform_indices = @transform_10, window_bounds = array<i64: 1, 128>}, {pipeline_mode = #tpu.pipeline_mode<synchronous>, transform_indices = @transform_11, window_bounds = array<i64: 128, 128>}, {pipeline_mode = #tpu.pipeline_mode<synchronous>, transform_indices = @transform_12, window_bounds = array<i64: 1, 128>}, {pipeline_mode = #tpu.pipeline_mode<synchronous>, transform_indices = @transform_13, window_bounds = array<i64: 1, 128>}, {pipeline_mode = #tpu.pipeline_mode<synchronous>, transform_indices = @transform_14, window_bounds = array<i64: 1, 128>}, {pipeline_mode = #tpu.pipeline_mode<synchronous>, transform_indices = @transform_15, window_bounds = array<i64: 1, 128>}, {pipeline_mode = #tpu.pipeline_mode<synchronous>, transform_indices = @transform_16, window_bounds = array<i64: 1, 128>}, {transform_indices = @transform_17, window_bounds = array<i64: 1, 8, 128>}]} {
    %c0_i32 = arith.constant 0 : i32
    %0 = arith.cmpi eq, %arg1, %c0_i32 : i32
    %1 = arith.extui %0 : i1 to i32
    %c0_i32_0 = arith.constant 0 : i32
    %2 = arith.cmpi ne, %1, %c0_i32_0 : i32
    scf.if %2 {
      %c0_53 = arith.constant 0 : index
      %c0_54 = arith.constant 0 : index
      %c0_55 = arith.constant 0 : index
      %126 = vector.load %arg2[%c0_53, %c0_54, %c0_55] : memref<1x8x128xf32, #tpu.memory_space<vmem>>, vector<1x8x128xf32>
      %127 = vector.shape_cast %126 : vector<1x8x128xf32> to vector<8x128xf32>
      %128 = arith.truncf %127 : vector<8x128xf32> to vector<8x128xbf16>
      %c0_56 = arith.constant 0 : index
      %c0_57 = arith.constant 0 : index
      %129 = vector.load %arg5[%c0_56, %c0_57] : memref<128x512xbf16, #tpu.memory_space<vmem>>, vector<128x512xbf16>
      %cst_58 = arith.constant dense<0.000000e+00> : vector<8x512xf32>
      %130 = tpu.matmul %128, %129, %cst_58 {dimension_numbers = #tpu.dot_dimension_numbers<[1], [0], [0], [1], [0, 0, 1, 1], [], []>} : vector<8x128xbf16>, vector<128x512xbf16>, vector<8x512xf32> -> vector<8x512xf32>
      %c0_59 = arith.constant 0 : index
      %c0_60 = arith.constant 0 : index
      %131 = vector.load %arg6[%c0_59, %c0_60] : memref<1x512xf32, #tpu.memory_space<vmem>>, vector<1x512xf32>
      %132 = vector.broadcast %131 : vector<1x512xf32> to vector<8x512xf32>
      %133 = arith.addf %130, %132 : vector<8x512xf32>
      %c0_61 = arith.constant 0 : index
      %c0_62 = arith.constant 0 : index
      %134 = vector.load %arg7[%c0_61, %c0_62] : memref<128x512xbf16, #tpu.memory_space<vmem>>, vector<128x512xbf16>
      %cst_63 = arith.constant dense<0.000000e+00> : vector<8x512xf32>
      %135 = tpu.matmul %128, %134, %cst_63 {dimension_numbers = #tpu.dot_dimension_numbers<[1], [0], [0], [1], [0, 0, 1, 1], [], []>} : vector<8x128xbf16>, vector<128x512xbf16>, vector<8x512xf32> -> vector<8x512xf32>
      %c0_64 = arith.constant 0 : index
      %c0_65 = arith.constant 0 : index
      %136 = vector.load %arg8[%c0_64, %c0_65] : memref<1x512xf32, #tpu.memory_space<vmem>>, vector<1x512xf32>
      %137 = vector.broadcast %136 : vector<1x512xf32> to vector<8x512xf32>
      %138 = arith.addf %135, %137 : vector<8x512xf32>
      %139 = vector.extract_strided_slice %133 {offsets = [0, 0], sizes = [8, 128], strides = [1, 1]} : vector<8x512xf32> to vector<8x128xf32>
      %140 = arith.truncf %139 : vector<8x128xf32> to vector<8x128xbf16>
      %c0_66 = arith.constant 0 : index
      %c0_67 = arith.constant 0 : index
      %c0_68 = arith.constant 0 : index
      %141 = vector.load %arg20[%c0_66, %c0_67, %c0_68] : memref<4x8x128xbf16, #tpu.memory_space<vmem>>, vector<1x8x128xbf16>
      %142 = vector.shape_cast %141 : vector<1x8x128xbf16> to vector<8x128xbf16>
      %143 = vector.shape_cast %140 : vector<8x128xbf16> to vector<1x8x128xbf16>
      tpu.vector_store %arg20[%c0_66, %c0_67, %c0_68], %143 {strides = array<i32>} : memref<4x8x128xbf16, #tpu.memory_space<vmem>>, vector<1x8x128xbf16>,
      %144 = vector.extract_strided_slice %138 {offsets = [0, 0], sizes = [8, 128], strides = [1, 1]} : vector<8x512xf32> to vector<8x128xf32>
      %145 = arith.truncf %144 : vector<8x128xf32> to vector<8x128xbf16>
      %c0_69 = arith.constant 0 : index
      %c0_70 = arith.constant 0 : index
      %c0_71 = arith.constant 0 : index
      %146 = vector.load %arg21[%c0_69, %c0_70, %c0_71] : memref<4x8x128xbf16, #tpu.memory_space<vmem>>, vector<1x8x128xbf16>
      %147 = vector.shape_cast %146 : vector<1x8x128xbf16> to vector<8x128xbf16>
      %148 = vector.shape_cast %145 : vector<8x128xbf16> to vector<1x8x128xbf16>
      tpu.vector_store %arg21[%c0_69, %c0_70, %c0_71], %148 {strides = array<i32>} : memref<4x8x128xbf16, #tpu.memory_space<vmem>>, vector<1x8x128xbf16>,
      %149 = vector.extract_strided_slice %133 {offsets = [0, 128], sizes = [8, 128], strides = [1, 1]} : vector<8x512xf32> to vector<8x128xf32>
      %150 = arith.truncf %149 : vector<8x128xf32> to vector<8x128xbf16>
      %c1 = arith.constant 1 : index
      %c0_72 = arith.constant 0 : index
      %c0_73 = arith.constant 0 : index
      %151 = vector.load %arg20[%c1, %c0_72, %c0_73] : memref<4x8x128xbf16, #tpu.memory_space<vmem>>, vector<1x8x128xbf16>
      %152 = vector.shape_cast %151 : vector<1x8x128xbf16> to vector<8x128xbf16>
      %153 = vector.shape_cast %150 : vector<8x128xbf16> to vector<1x8x128xbf16>
      tpu.vector_store %arg20[%c1, %c0_72, %c0_73], %153 {strides = array<i32>} : memref<4x8x128xbf16, #tpu.memory_space<vmem>>, vector<1x8x128xbf16>,
      %154 = vector.extract_strided_slice %138 {offsets = [0, 128], sizes = [8, 128], strides = [1, 1]} : vector<8x512xf32> to vector<8x128xf32>
      %155 = arith.truncf %154 : vector<8x128xf32> to vector<8x128xbf16>
      %c1_74 = arith.constant 1 : index
      %c0_75 = arith.constant 0 : index
      %c0_76 = arith.constant 0 : index
      %156 = vector.load %arg21[%c1_74, %c0_75, %c0_76] : memref<4x8x128xbf16, #tpu.memory_space<vmem>>, vector<1x8x128xbf16>
      %157 = vector.shape_cast %156 : vector<1x8x128xbf16> to vector<8x128xbf16>
      %158 = vector.shape_cast %155 : vector<8x128xbf16> to vector<1x8x128xbf16>
      tpu.vector_store %arg21[%c1_74, %c0_75, %c0_76], %158 {strides = array<i32>} : memref<4x8x128xbf16, #tpu.memory_space<vmem>>, vector<1x8x128xbf16>,
      %159 = vector.extract_strided_slice %133 {offsets = [0, 256], sizes = [8, 128], strides = [1, 1]} : vector<8x512xf32> to vector<8x128xf32>
      %160 = arith.truncf %159 : vector<8x128xf32> to vector<8x128xbf16>
      %c2 = arith.constant 2 : index
      %c0_77 = arith.constant 0 : index
      %c0_78 = arith.constant 0 : index
      %161 = vector.load %arg20[%c2, %c0_77, %c0_78] : memref<4x8x128xbf16, #tpu.memory_space<vmem>>, vector<1x8x128xbf16>
      %162 = vector.shape_cast %161 : vector<1x8x128xbf16> to vector<8x128xbf16>
      %163 = vector.shape_cast %160 : vector<8x128xbf16> to vector<1x8x128xbf16>
      tpu.vector_store %arg20[%c2, %c0_77, %c0_78], %163 {strides = array<i32>} : memref<4x8x128xbf16, #tpu.memory_space<vmem>>, vector<1x8x128xbf16>,
      %164 = vector.extract_strided_slice %138 {offsets = [0, 256], sizes = [8, 128], strides = [1, 1]} : vector<8x512xf32> to vector<8x128xf32>
      %165 = arith.truncf %164 : vector<8x128xf32> to vector<8x128xbf16>
      %c2_79 = arith.constant 2 : index
      %c0_80 = arith.constant 0 : index
      %c0_81 = arith.constant 0 : index
      %166 = vector.load %arg21[%c2_79, %c0_80, %c0_81] : memref<4x8x128xbf16, #tpu.memory_space<vmem>>, vector<1x8x128xbf16>
      %167 = vector.shape_cast %166 : vector<1x8x128xbf16> to vector<8x128xbf16>
      %168 = vector.shape_cast %165 : vector<8x128xbf16> to vector<1x8x128xbf16>
      tpu.vector_store %arg21[%c2_79, %c0_80, %c0_81], %168 {strides = array<i32>} : memref<4x8x128xbf16, #tpu.memory_space<vmem>>, vector<1x8x128xbf16>,
      %169 = vector.extract_strided_slice %133 {offsets = [0, 384], sizes = [8, 128], strides = [1, 1]} : vector<8x512xf32> to vector<8x128xf32>
      %170 = arith.truncf %169 : vector<8x128xf32> to vector<8x128xbf16>
      %c3 = arith.constant 3 : index
      %c0_82 = arith.constant 0 : index
      %c0_83 = arith.constant 0 : index
      %171 = vector.load %arg20[%c3, %c0_82, %c0_83] : memref<4x8x128xbf16, #tpu.memory_space<vmem>>, vector<1x8x128xbf16>
      %172 = vector.shape_cast %171 : vector<1x8x128xbf16> to vector<8x128xbf16>
      %173 = vector.shape_cast %170 : vector<8x128xbf16> to vector<1x8x128xbf16>
      tpu.vector_store %arg20[%c3, %c0_82, %c0_83], %173 {strides = array<i32>} : memref<4x8x128xbf16, #tpu.memory_space<vmem>>, vector<1x8x128xbf16>,
      %174 = vector.extract_strided_slice %138 {offsets = [0, 384], sizes = [8, 128], strides = [1, 1]} : vector<8x512xf32> to vector<8x128xf32>
      %175 = arith.truncf %174 : vector<8x128xf32> to vector<8x128xbf16>
      %c3_84 = arith.constant 3 : index
      %c0_85 = arith.constant 0 : index
      %c0_86 = arith.constant 0 : index
      %176 = vector.load %arg21[%c3_84, %c0_85, %c0_86] : memref<4x8x128xbf16, #tpu.memory_space<vmem>>, vector<1x8x128xbf16>
      %177 = vector.shape_cast %176 : vector<1x8x128xbf16> to vector<8x128xbf16>
      %178 = vector.shape_cast %175 : vector<8x128xbf16> to vector<1x8x128xbf16>
      tpu.vector_store %arg21[%c3_84, %c0_85, %c0_86], %178 {strides = array<i32>} : memref<4x8x128xbf16, #tpu.memory_space<vmem>>, vector<1x8x128xbf16>,
    } else {
    }
    %c8_i32 = arith.constant 8 : i32
    %3 = arith.muli %arg1, %c8_i32 : i32
    %4 = tpu.assume_multiple %3, 8 : i32
    %c0 = arith.constant 0 : index
    %5 = arith.index_cast %4 : i32 to index
    %c0_1 = arith.constant 0 : index
    %6 = vector.load %arg2[%c0, %5, %c0_1] : memref<1x8x128xf32, #tpu.memory_space<vmem>>, vector<1x8x128xf32>
    %7 = vector.shape_cast %6 : vector<1x8x128xf32> to vector<8x128xf32>
    %8 = arith.truncf %7 : vector<8x128xf32> to vector<8x128xbf16>
    %c0_2 = arith.constant 0 : index
    %c0_3 = arith.constant 0 : index
    %9 = vector.load %arg3[%c0_2, %c0_3] : memref<128x512xbf16, #tpu.memory_space<vmem>>, vector<128x512xbf16>
    %cst = arith.constant dense<0.000000e+00> : vector<8x512xf32>
    %10 = tpu.matmul %8, %9, %cst {dimension_numbers = #tpu.dot_dimension_numbers<[1], [0], [0], [1], [0, 0, 1, 1], [], []>} : vector<8x128xbf16>, vector<128x512xbf16>, vector<8x512xf32> -> vector<8x512xf32>
    %c0_4 = arith.constant 0 : index
    %c0_5 = arith.constant 0 : index
    %11 = vector.load %arg4[%c0_4, %c0_5] : memref<1x512xf32, #tpu.memory_space<vmem>>, vector<1x512xf32>
    %12 = vector.broadcast %11 : vector<1x512xf32> to vector<8x512xf32>
    %13 = arith.addf %10, %12 : vector<8x512xf32>
    %14 = vector.extract_strided_slice %13 {offsets = [0, 0], sizes = [8, 128], strides = [1, 1]} : vector<8x512xf32> to vector<8x128xf32>
    %15 = vector.extract_strided_slice %13 {offsets = [0, 128], sizes = [8, 128], strides = [1, 1]} : vector<8x512xf32> to vector<8x128xf32>
    %16 = vector.extract_strided_slice %13 {offsets = [0, 256], sizes = [8, 128], strides = [1, 1]} : vector<8x512xf32> to vector<8x128xf32>
    %17 = vector.extract_strided_slice %13 {offsets = [0, 384], sizes = [8, 128], strides = [1, 1]} : vector<8x512xf32> to vector<8x128xf32>
    %18 = vector.shape_cast %14 : vector<8x128xf32> to vector<1x8x128xf32>
    %19 = vector.shape_cast %15 : vector<8x128xf32> to vector<1x8x128xf32>
    %20 = vector.shape_cast %16 : vector<8x128xf32> to vector<1x8x128xf32>
    %21 = vector.shape_cast %17 : vector<8x128xf32> to vector<1x8x128xf32>
    %22 = tpu.concatenate %18, %19, %20, %21 in 0 : vector<1x8x128xf32>, vector<1x8x128xf32>, vector<1x8x128xf32>, vector<1x8x128xf32> -> vector<4x8x128xf32>
    %23 = arith.truncf %22 : vector<4x8x128xf32> to vector<4x8x128xbf16>
    %c0_6 = arith.constant 0 : index
    %c0_7 = arith.constant 0 : index
    %c0_8 = arith.constant 0 : index
    %24 = vector.load %arg20[%c0_6, %c0_7, %c0_8] : memref<4x8x128xbf16, #tpu.memory_space<vmem>>, vector<4x8x128xbf16>
    "tpu.trace_start"() <{level = 10 : i32, message = "hqd,hkd->hqk"}> : () -> ()
    %cst_9 = arith.constant dense<0.000000e+00> : vector<4x8x8xf32>
    %25 = tpu.matmul %23, %24, %cst_9 {dimension_numbers = #tpu.dot_dimension_numbers<[2], [2], [1], [1], [0, 0, 0, 1, 1, 1], [0], [0]>} : vector<4x8x128xbf16>, vector<4x8x128xbf16>, vector<4x8x8xf32> -> vector<4x8x8xf32>
    "tpu.trace_stop"() : () -> ()
    %cst_10 = arith.constant dense<0xFF800000> : vector<4x8xf32>
    %26 = vector.multi_reduction <maximumf>, %25, %cst_10 [2] : vector<4x8x8xf32> to vector<4x8xf32>
    %27 = vector.shape_cast %26 : vector<4x8xf32> to vector<4x8x1xf32>
    %28 = vector.broadcast %27 : vector<4x8x1xf32> to vector<4x8x8xf32>
    %29 = arith.subf %25, %28 : vector<4x8x8xf32>
    %30 = math.exp %29 : vector<4x8x8xf32>
    %cst_11 = arith.constant dense<0.000000e+00> : vector<4x8xf32>
    %31 = vector.multi_reduction <add>, %30, %cst_11 [2] : vector<4x8x8xf32> to vector<4x8xf32>
    %32 = vector.shape_cast %31 : vector<4x8xf32> to vector<4x8x1xf32>
    %33 = tpu.reciprocal %32 {approx = true} : vector<4x8x1xf32> -> vector<4x8x1xf32>
    %34 = vector.broadcast %33 : vector<4x8x1xf32> to vector<4x8x8xf32>
    %35 = arith.mulf %30, %34 : vector<4x8x8xf32>
    %36 = arith.truncf %35 : vector<4x8x8xf32> to vector<4x8x8xbf16>
    %c0_12 = arith.constant 0 : index
    %c0_13 = arith.constant 0 : index
    %c0_14 = arith.constant 0 : index
    %37 = vector.load %arg21[%c0_12, %c0_13, %c0_14] : memref<4x8x128xbf16, #tpu.memory_space<vmem>>, vector<4x8x128xbf16>
    "tpu.trace_start"() <{level = 10 : i32, message = "hqk,hkd->hqd"}> : () -> ()
    %cst_15 = arith.constant dense<0.000000e+00> : vector<4x8x128xf32>
    %38 = tpu.matmul %36, %37, %cst_15 {dimension_numbers = #tpu.dot_dimension_numbers<[2], [1], [1], [2], [0, 0, 0, 1, 1, 2], [0], [0]>} : vector<4x8x8xbf16>, vector<4x8x128xbf16>, vector<4x8x128xf32> -> vector<4x8x128xf32>
    "tpu.trace_stop"() : () -> ()
    %39 = vector.extract_strided_slice %38 {offsets = [0, 0, 0], sizes = [1, 8, 128], strides = [1, 1, 1]} : vector<4x8x128xf32> to vector<1x8x128xf32>
    %40 = vector.shape_cast %39 : vector<1x8x128xf32> to vector<8x128xf32>
    %41 = vector.extract_strided_slice %38 {offsets = [1, 0, 0], sizes = [1, 8, 128], strides = [1, 1, 1]} : vector<4x8x128xf32> to vector<1x8x128xf32>
    %42 = vector.shape_cast %41 : vector<1x8x128xf32> to vector<8x128xf32>
    %43 = vector.extract_strided_slice %38 {offsets = [2, 0, 0], sizes = [1, 8, 128], strides = [1, 1, 1]} : vector<4x8x128xf32> to vector<1x8x128xf32>
    %44 = vector.shape_cast %43 : vector<1x8x128xf32> to vector<8x128xf32>
    %45 = vector.extract_strided_slice %38 {offsets = [3, 0, 0], sizes = [1, 8, 128], strides = [1, 1, 1]} : vector<4x8x128xf32> to vector<1x8x128xf32>
    %46 = vector.shape_cast %45 : vector<1x8x128xf32> to vector<8x128xf32>
    %47 = tpu.concatenate %40, %42, %44, %46 in 1 : vector<8x128xf32>, vector<8x128xf32>, vector<8x128xf32>, vector<8x128xf32> -> vector<8x512xf32>
    %48 = arith.truncf %47 : vector<8x512xf32> to vector<8x512xbf16>
    %c0_16 = arith.constant 0 : index
    %c0_17 = arith.constant 0 : index
    %49 = vector.load %arg9[%c0_16, %c0_17] : memref<512x128xbf16, #tpu.memory_space<vmem>>, vector<512x128xbf16>
    %cst_18 = arith.constant dense<0.000000e+00> : vector<8x128xf32>
    %50 = tpu.matmul %48, %49, %cst_18 {dimension_numbers = #tpu.dot_dimension_numbers<[1], [0], [0], [1], [0, 0, 1, 1], [], []>} : vector<8x512xbf16>, vector<512x128xbf16>, vector<8x128xf32> -> vector<8x128xf32>
    %c0_19 = arith.constant 0 : index
    %c0_20 = arith.constant 0 : index
    %51 = vector.load %arg10[%c0_19, %c0_20] : memref<1x128xf32, #tpu.memory_space<vmem>>, vector<1x128xf32>
    %52 = vector.broadcast %51 : vector<1x128xf32> to vector<8x128xf32>
    %53 = arith.addf %50, %52 : vector<8x128xf32>
    %54 = tpu.iota {dimensions = array<i32: 1>} : vector<1x128xi32>
    %c32_i32 = arith.constant 32 : i32
    %55 = vector.broadcast %c32_i32 : i32 to vector<1x128xi32>
    %56 = arith.cmpi slt, %54, %55 : vector<1x128xi32>
    %57 = arith.extui %56 : vector<1x128xi1> to vector<1x128xi32>
    %58 = arith.sitofp %57 : vector<1x128xi32> to vector<1x128xf32>
    %59 = arith.addf %7, %53 : vector<8x128xf32>
    %c0_21 = arith.constant 0 : index
    %c0_22 = arith.constant 0 : index
    %60 = vector.load %arg15[%c0_21, %c0_22] : memref<1x128xf32, #tpu.memory_space<vmem>>, vector<1x128xf32>
    %c0_23 = arith.constant 0 : index
    %c0_24 = arith.constant 0 : index
    %61 = vector.load %arg16[%c0_23, %c0_24] : memref<1x128xf32, #tpu.memory_space<vmem>>, vector<1x128xf32>
    %cst_25 = arith.constant dense<0.000000e+00> : vector<8xf32>
    %62 = vector.multi_reduction <add>, %59, %cst_25 [1] : vector<8x128xf32> to vector<8xf32>
    %63 = vector.shape_cast %62 : vector<8xf32> to vector<8x1xf32>
    %cst_26 = arith.constant 3.125000e-02 : f32
    %64 = vector.broadcast %cst_26 : f32 to vector<8x1xf32>
    %65 = arith.mulf %63, %64 : vector<8x1xf32>
    %66 = vector.broadcast %65 : vector<8x1xf32> to vector<8x128xf32>
    %67 = arith.subf %59, %66 : vector<8x128xf32>
    %68 = vector.broadcast %58 : vector<1x128xf32> to vector<8x128xf32>
    %69 = arith.mulf %67, %68 : vector<8x128xf32>
    %70 = arith.mulf %69, %69 : vector<8x128xf32>
    %cst_27 = arith.constant dense<0.000000e+00> : vector<8xf32>
    %71 = vector.multi_reduction <add>, %70, %cst_27 [1] : vector<8x128xf32> to vector<8xf32>
    %72 = vector.shape_cast %71 : vector<8xf32> to vector<8x1xf32>
    %cst_28 = arith.constant 3.125000e-02 : f32
    %73 = vector.broadcast %cst_28 : f32 to vector<8x1xf32>
    %74 = arith.mulf %72, %73 : vector<8x1xf32>
    %cst_29 = arith.constant 9.99999974E-6 : f32
    %75 = vector.broadcast %cst_29 : f32 to vector<8x1xf32>
    %76 = arith.addf %74, %75 : vector<8x1xf32>
    %77 = math.rsqrt %76 : vector<8x1xf32>
    %78 = vector.broadcast %77 : vector<8x1xf32> to vector<8x128xf32>
    %79 = arith.mulf %69, %78 : vector<8x128xf32>
    %80 = vector.broadcast %60 : vector<1x128xf32> to vector<8x128xf32>
    %81 = arith.mulf %79, %80 : vector<8x128xf32>
    %82 = vector.broadcast %61 : vector<1x128xf32> to vector<8x128xf32>
    %83 = arith.addf %81, %82 : vector<8x128xf32>
    %84 = arith.truncf %83 : vector<8x128xf32> to vector<8x128xbf16>
    %c0_30 = arith.constant 0 : index
    %c0_31 = arith.constant 0 : index
    %85 = vector.load %arg11[%c0_30, %c0_31] : memref<128x128xbf16, #tpu.memory_space<vmem>>, vector<128x128xbf16>
    %cst_32 = arith.constant dense<0.000000e+00> : vector<8x128xf32>
    %86 = tpu.matmul %84, %85, %cst_32 {dimension_numbers = #tpu.dot_dimension_numbers<[1], [0], [0], [1], [0, 0, 1, 1], [], []>} : vector<8x128xbf16>, vector<128x128xbf16>, vector<8x128xf32> -> vector<8x128xf32>
    %c0_33 = arith.constant 0 : index
    %c0_34 = arith.constant 0 : index
    %87 = vector.load %arg12[%c0_33, %c0_34] : memref<1x128xf32, #tpu.memory_space<vmem>>, vector<1x128xf32>
    %88 = vector.broadcast %87 : vector<1x128xf32> to vector<8x128xf32>
    %89 = arith.addf %86, %88 : vector<8x128xf32>
    %cst_35 = arith.constant 0.000000e+00 : f32
    %90 = vector.broadcast %cst_35 : f32 to vector<8x128xf32>
    %91 = arith.maximumf %89, %90 : vector<8x128xf32>
    %92 = arith.truncf %91 : vector<8x128xf32> to vector<8x128xbf16>
    %c0_36 = arith.constant 0 : index
    %c0_37 = arith.constant 0 : index
    %93 = vector.load %arg13[%c0_36, %c0_37] : memref<128x128xbf16, #tpu.memory_space<vmem>>, vector<128x128xbf16>
    %cst_38 = arith.constant dense<0.000000e+00> : vector<8x128xf32>
    %94 = tpu.matmul %92, %93, %cst_38 {dimension_numbers = #tpu.dot_dimension_numbers<[1], [0], [0], [1], [0, 0, 1, 1], [], []>} : vector<8x128xbf16>, vector<128x128xbf16>, vector<8x128xf32> -> vector<8x128xf32>
    %c0_39 = arith.constant 0 : index
    %c0_40 = arith.constant 0 : index
    %95 = vector.load %arg14[%c0_39, %c0_40] : memref<1x128xf32, #tpu.memory_space<vmem>>, vector<1x128xf32>
    %96 = vector.broadcast %95 : vector<1x128xf32> to vector<8x128xf32>
    %97 = arith.addf %94, %96 : vector<8x128xf32>
    %98 = arith.addf %83, %97 : vector<8x128xf32>
    %c0_41 = arith.constant 0 : index
    %c0_42 = arith.constant 0 : index
    %99 = vector.load %arg17[%c0_41, %c0_42] : memref<1x128xf32, #tpu.memory_space<vmem>>, vector<1x128xf32>
    %c0_43 = arith.constant 0 : index
    %c0_44 = arith.constant 0 : index
    %100 = vector.load %arg18[%c0_43, %c0_44] : memref<1x128xf32, #tpu.memory_space<vmem>>, vector<1x128xf32>
    %cst_45 = arith.constant dense<0.000000e+00> : vector<8xf32>
    %101 = vector.multi_reduction <add>, %98, %cst_45 [1] : vector<8x128xf32> to vector<8xf32>
    %102 = vector.shape_cast %101 : vector<8xf32> to vector<8x1xf32>
    %cst_46 = arith.constant 3.125000e-02 : f32
    %103 = vector.broadcast %cst_46 : f32 to vector<8x1xf32>
    %104 = arith.mulf %102, %103 : vector<8x1xf32>
    %105 = vector.broadcast %104 : vector<8x1xf32> to vector<8x128xf32>
    %106 = arith.subf %98, %105 : vector<8x128xf32>
    %107 = vector.broadcast %58 : vector<1x128xf32> to vector<8x128xf32>
    %108 = arith.mulf %106, %107 : vector<8x128xf32>
    %109 = arith.mulf %108, %108 : vector<8x128xf32>
    %cst_47 = arith.constant dense<0.000000e+00> : vector<8xf32>
    %110 = vector.multi_reduction <add>, %109, %cst_47 [1] : vector<8x128xf32> to vector<8xf32>
    %111 = vector.shape_cast %110 : vector<8xf32> to vector<8x1xf32>
    %cst_48 = arith.constant 3.125000e-02 : f32
    %112 = vector.broadcast %cst_48 : f32 to vector<8x1xf32>
    %113 = arith.mulf %111, %112 : vector<8x1xf32>
    %cst_49 = arith.constant 9.99999974E-6 : f32
    %114 = vector.broadcast %cst_49 : f32 to vector<8x1xf32>
    %115 = arith.addf %113, %114 : vector<8x1xf32>
    %116 = math.rsqrt %115 : vector<8x1xf32>
    %117 = vector.broadcast %116 : vector<8x1xf32> to vector<8x128xf32>
    %118 = arith.mulf %108, %117 : vector<8x128xf32>
    %119 = vector.broadcast %99 : vector<1x128xf32> to vector<8x128xf32>
    %120 = arith.mulf %118, %119 : vector<8x128xf32>
    %121 = vector.broadcast %100 : vector<1x128xf32> to vector<8x128xf32>
    %122 = arith.addf %120, %121 : vector<8x128xf32>
    %c0_50 = arith.constant 0 : index
    %c0_51 = arith.constant 0 : index
    %c0_52 = arith.constant 0 : index
    %123 = vector.load %arg19[%c0_50, %c0_51, %c0_52] : memref<1x8x128xf32, #tpu.memory_space<vmem>>, vector<1x8x128xf32>
    %124 = vector.shape_cast %123 : vector<1x8x128xf32> to vector<8x128xf32>
    %125 = vector.shape_cast %122 : vector<8x128xf32> to vector<1x8x128xf32>
    tpu.vector_store %arg19[%c0_50, %c0_51, %c0_52], %125 {strides = array<i32>} : memref<1x8x128xf32, #tpu.memory_space<vmem>>, vector<1x8x128xf32>,
    return
  }
  func.func @transform_0(%arg0: i32, %arg1: i32) -> (i32, i32, i32) {
    %c0_i32 = arith.constant 0 : i32
    %c0_i32_0 = arith.constant 0 : i32
    %c0_i32_1 = arith.constant 0 : i32
    return %arg0, %c0_i32, %c0_i32_0 : i32, i32, i32
  }
  func.func @transform_1(%arg0: i32, %arg1: i32) -> (i32, i32) {
    %c0_i32 = arith.constant 0 : i32
    %c0_i32_0 = arith.constant 0 : i32
    %c0_i32_1 = arith.constant 0 : i32
    return %c0_i32, %c0_i32_0 : i32, i32
  }
  func.func @transform_2(%arg0: i32, %arg1: i32) -> (i32, i32) {
    %c0_i32 = arith.constant 0 : i32
    %c0_i32_0 = arith.constant 0 : i32
    %c0_i32_1 = arith.constant 0 : i32
    return %c0_i32, %c0_i32_0 : i32, i32
  }
  func.func @transform_3(%arg0: i32, %arg1: i32) -> (i32, i32) {
    %c0_i32 = arith.constant 0 : i32
    %c0_i32_0 = arith.constant 0 : i32
    %c0_i32_1 = arith.constant 0 : i32
    return %c0_i32, %c0_i32_0 : i32, i32
  }
  func.func @transform_4(%arg0: i32, %arg1: i32) -> (i32, i32) {
    %c0_i32 = arith.constant 0 : i32
    %c0_i32_0 = arith.constant 0 : i32
    %c0_i32_1 = arith.constant 0 : i32
    return %c0_i32, %c0_i32_0 : i32, i32
  }
  func.func @transform_5(%arg0: i32, %arg1: i32) -> (i32, i32) {
    %c0_i32 = arith.constant 0 : i32
    %c0_i32_0 = arith.constant 0 : i32
    %c0_i32_1 = arith.constant 0 : i32
    return %c0_i32, %c0_i32_0 : i32, i32
  }
  func.func @transform_6(%arg0: i32, %arg1: i32) -> (i32, i32) {
    %c0_i32 = arith.constant 0 : i32
    %c0_i32_0 = arith.constant 0 : i32
    %c0_i32_1 = arith.constant 0 : i32
    return %c0_i32, %c0_i32_0 : i32, i32
  }
  func.func @transform_7(%arg0: i32, %arg1: i32) -> (i32, i32) {
    %c0_i32 = arith.constant 0 : i32
    %c0_i32_0 = arith.constant 0 : i32
    %c0_i32_1 = arith.constant 0 : i32
    return %c0_i32, %c0_i32_0 : i32, i32
  }
  func.func @transform_8(%arg0: i32, %arg1: i32) -> (i32, i32) {
    %c0_i32 = arith.constant 0 : i32
    %c0_i32_0 = arith.constant 0 : i32
    %c0_i32_1 = arith.constant 0 : i32
    return %c0_i32, %c0_i32_0 : i32, i32
  }
  func.func @transform_9(%arg0: i32, %arg1: i32) -> (i32, i32) {
    %c0_i32 = arith.constant 0 : i32
    %c0_i32_0 = arith.constant 0 : i32
    %c0_i32_1 = arith.constant 0 : i32
    return %c0_i32, %c0_i32_0 : i32, i32
  }
  func.func @transform_10(%arg0: i32, %arg1: i32) -> (i32, i32) {
    %c0_i32 = arith.constant 0 : i32
    %c0_i32_0 = arith.constant 0 : i32
    %c0_i32_1 = arith.constant 0 : i32
    return %c0_i32, %c0_i32_0 : i32, i32
  }
  func.func @transform_11(%arg0: i32, %arg1: i32) -> (i32, i32) {
    %c0_i32 = arith.constant 0 : i32
    %c0_i32_0 = arith.constant 0 : i32
    %c0_i32_1 = arith.constant 0 : i32
    return %c0_i32, %c0_i32_0 : i32, i32
  }
  func.func @transform_12(%arg0: i32, %arg1: i32) -> (i32, i32) {
    %c0_i32 = arith.constant 0 : i32
    %c0_i32_0 = arith.constant 0 : i32
    %c0_i32_1 = arith.constant 0 : i32
    return %c0_i32, %c0_i32_0 : i32, i32
  }
  func.func @transform_13(%arg0: i32, %arg1: i32) -> (i32, i32) {
    %c0_i32 = arith.constant 0 : i32
    %c0_i32_0 = arith.constant 0 : i32
    %c0_i32_1 = arith.constant 0 : i32
    return %c0_i32, %c0_i32_0 : i32, i32
  }
  func.func @transform_14(%arg0: i32, %arg1: i32) -> (i32, i32) {
    %c0_i32 = arith.constant 0 : i32
    %c0_i32_0 = arith.constant 0 : i32
    %c0_i32_1 = arith.constant 0 : i32
    return %c0_i32, %c0_i32_0 : i32, i32
  }
  func.func @transform_15(%arg0: i32, %arg1: i32) -> (i32, i32) {
    %c0_i32 = arith.constant 0 : i32
    %c0_i32_0 = arith.constant 0 : i32
    %c0_i32_1 = arith.constant 0 : i32
    return %c0_i32, %c0_i32_0 : i32, i32
  }
  func.func @transform_16(%arg0: i32, %arg1: i32) -> (i32, i32) {
    %c0_i32 = arith.constant 0 : i32
    %c0_i32_0 = arith.constant 0 : i32
    %c0_i32_1 = arith.constant 0 : i32
    return %c0_i32, %c0_i32_0 : i32, i32
  }
  func.func @transform_17(%arg0: i32, %arg1: i32) -> (i32, i32, i32) {
    %c0_i32 = arith.constant 0 : i32
    %c0_i32_0 = arith.constant 0 : i32
    return %arg0, %arg1, %c0_i32 : i32, i32, i32
  }
}

</mosaic_0001>

<llo_original>
// kernel: tpu_custom_call.1
$region0: #{tpu_custom_call.1}
  #allocation0 [shape = 'u32[]', space=smem, size = 0x4, offset = 0x4, fixed_abs, tag = 'smem constant byte address 0x4 - core index']
  #allocation1 [shape = 'u32[144,128]{1,0:T(1,128)}', space=vmem, size = 0x12000, scoped, tag = 'internal scratch']
  #allocation2 [shape = 'bf16[4,8,128]{2,1,0:T(8,128)(2,1)}', space=vmem, size = 0x2000, scoped, tag = 'scratch operand']
  #allocation3 [shape = 'bf16[4,8,128]{2,1,0:T(8,128)(2,1)}', space=vmem, size = 0x2000, scoped, tag = 'scratch operand']
  %s0 = inlined_call_operand.hbm [shape: f32[2,8,128], index: 0, kind: input, shape index: {}]
  %s1 = inlined_call_operand.hbm [shape: bf16[128,512], index: 1, kind: input, shape index: {}]
  %s2 = inlined_call_operand.vmem [shape: f32[1,512], index: 2, kind: input, shape index: {}]
  %s3 = inlined_call_operand.hbm [shape: bf16[128,512], index: 3, kind: input, shape index: {}]
  %s4 = inlined_call_operand.vmem [shape: f32[1,512], index: 4, kind: input, shape index: {}]
  %s5 = inlined_call_operand.hbm [shape: bf16[128,512], index: 5, kind: input, shape index: {}]
  %s6 = inlined_call_operand.vmem [shape: f32[1,512], index: 6, kind: input, shape index: {}]
  %s7 = inlined_call_operand.hbm [shape: bf16[512,128], index: 7, kind: input, shape index: {}]
  %s8 = inlined_call_operand.vmem [shape: f32[1,128], index: 8, kind: input, shape index: {}]
  %s9 = inlined_call_operand.hbm [shape: bf16[128,128], index: 9, kind: input, shape index: {}]
  %s10 = inlined_call_operand.vmem [shape: f32[1,128], index: 10, kind: input, shape index: {}]
  %s11 = inlined_call_operand.hbm [shape: bf16[128,128], index: 11, kind: input, shape index: {}]
  %s12 = inlined_call_operand.vmem [shape: f32[1,128], index: 12, kind: input, shape index: {}]
  %s13 = inlined_call_operand.vmem [shape: f32[1,128], index: 13, kind: input, shape index: {}]
  %s14 = inlined_call_operand.vmem [shape: f32[1,128], index: 14, kind: input, shape index: {}]
  %s15 = inlined_call_operand.vmem [shape: f32[1,128], index: 15, kind: input, shape index: {}]
  %s16 = inlined_call_operand.vmem [shape: f32[1,128], index: 16, kind: input, shape index: {}]
  %s17 = inlined_call_operand.hbm [shape: f32[2,8,128], index: 17, kind: output, shape index: {}]
  %s18 = sld [smem:[#allocation0]]
  $region133: #{tpu_custom_call.1} parent=0
    _
  %s20 = ssub.s32 1, %s18
  %s21 = scalar_select 0, %s20, %s18
  $region1: #{tpu_custom_call.1} parent=0
    #allocation4 [shape = 'u8[8192]{0}', space=vmem, size = 0x2000, scoped, tag = 'input window, operand 0']
    #allocation5 [shape = 's32[2]{0}', space=sflag, size = 0x8, scoped, tag = 'scoped memory for tpu_custom_call.1']
    #allocation6 [shape = 's32[2]{0}', space=sflag, size = 0x8, scoped, tag = 'scoped memory for tpu_custom_call.1']
    #allocation7 [shape = 'u8[131072]{0}', space=vmem, size = 0x20000, scoped, tag = 'input window, operand 1, single buffered']
    #allocation8 [shape = 's32[1]{0}', space=sflag, size = 0x4, scoped, tag = 'scoped memory for tpu_custom_call.1']
    #allocation9 [shape = 'u8[131072]{0}', space=vmem, size = 0x20000, scoped, tag = 'input window, operand 3, single buffered']
    #allocation10 [shape = 'u8[131072]{0}', space=vmem, size = 0x20000, scoped, tag = 'input window, operand 5, single buffered']
    #allocation11 [shape = 's32[1]{0}', space=sflag, size = 0x4, scoped, tag = 'scoped memory for tpu_custom_call.1']
    #allocation12 [shape = 'u8[131072]{0}', space=vmem, size = 0x20000, scoped, tag = 'input window, operand 7, single buffered']
    #allocation13 [shape = 'u8[32768]{0}', space=vmem, size = 0x8000, scoped, tag = 'input window, operand 9, single buffered']
    #allocation14 [shape = 's32[1]{0}', space=sflag, size = 0x4, scoped, tag = 'scoped memory for tpu_custom_call.1']
    #allocation15 [shape = 'u8[32768]{0}', space=vmem, size = 0x8000, scoped, tag = 'input window, operand 11, single buffered']
    #allocation16 [shape = 'u8[8192]{0}', space=vmem, size = 0x2000, scoped, tag = 'output window, operand 0']
    %22 = vsyncpa [#allocation5], 0
    %s23 = scalar_lea.sflag [#allocation5], 1
    %24 = vsyncpa %s23, 0
    %25 = vsyncpa [#allocation8], 0
    %26 = vsyncpa [#allocation11], 0
    %27 = vsyncpa [#allocation14], 0
    %28 = vsyncpa [#allocation6], 0
    %s29 = scalar_lea.sflag [#allocation6], 1
    %30 = vsyncpa %s29, 0
    loop: start=0, step=1, limit=4
    $region2: #{tpu_custom_call.1} parent=1 // loop_pre_header
      _
    $region3: #{tpu_custom_call.1} parent=1 // loop_header
      %s32 = sphi 0, %s36
      %p33 = scmp.ge.s32.totalorder %s32, 4
      %s39 = sphi 0, %s51
      %s40 = sphi 0, %s47
      %s41 = sphi 0, %s39
      %s42 = sphi 0, %s40
      %s43 = sphi 0, %s41
      %s44 = sphi 0, %s42
      %s54 = sphi 0, %s56
      %s57 = sphi 0, %s54
      %s58 = sphi 0, %s57
      %s74 = sphi 0, %s58
      %s78 = sphi 0, %s78
      %s80 = sphi 0, %s78
      %s81 = sphi 0, %s80
      %s95 = sphi 0, %s81
      %s99 = sphi 0, %s99
      %s101 = sphi 0, %s99
      %s102 = sphi 0, %s101
      %s116 = sphi 0, %s102
      %s120 = sphi 0, %s120
      %s122 = sphi 0, %s120
      %s123 = sphi 0, %s122
      %s137 = sphi 0, %s123
      %s141 = sphi 0, %s141
      %s143 = sphi 0, %s141
      %s144 = sphi 0, %s143
      %s158 = sphi 0, %s144
      %s162 = sphi 0, %s162
      %s164 = sphi 0, %s162
      %s165 = sphi 0, %s164
      %s179 = sphi 0, %s165
      %s183 = sphi 0, %s183
      %s185 = sphi 0, %s183
      %s186 = sphi 0, %s185
      %s200 = sphi 0, %s186
      %s204 = sphi 0, %s204
      %s206 = sphi 0, %s204
      %s207 = sphi 0, %s206
      %s221 = sphi 0, %s207
      %s225 = sphi 0, %s225
      %s227 = sphi 0, %s225
      %s228 = sphi 0, %s227
      %s242 = sphi 0, %s228
      %s246 = sphi 0, %s246
      %s248 = sphi 0, %s246
      %s249 = sphi 0, %s248
      %s263 = sphi 0, %s249
      %s267 = sphi 0, %s267
      %s269 = sphi 0, %s267
      %s270 = sphi 0, %s269
      %s284 = sphi 0, %s270
      %s288 = sphi 0, %s288
      %s290 = sphi 0, %s288
      %s291 = sphi 0, %s290
      %s305 = sphi 0, %s291
      %s309 = sphi 0, %s309
      %s311 = sphi 0, %s309
      %s312 = sphi 0, %s311
      %s326 = sphi 0, %s312
      %s330 = sphi 0, %s330
      %s332 = sphi 0, %s330
      %s333 = sphi 0, %s332
      %s347 = sphi 0, %s333
      %s351 = sphi 0, %s351
      %s353 = sphi 0, %s351
      %s354 = sphi 0, %s353
      %s368 = sphi 0, %s354
      %s372 = sphi 0, %s372
      %s374 = sphi 0, %s372
      %s375 = sphi 0, %s374
      %s389 = sphi 0, %s375
      %s393 = sphi 0, %s393
      %s395 = sphi 0, %s393
      %s396 = sphi 0, %s395
      %s410 = sphi 0, %s396
      %s418 = sphi 0, %s420
      %s421 = sphi 0, %s418
      %s422 = sphi 0, %s421
      %s438 = sphi 0, %s422
    $region4: #{tpu_custom_call.1} parent=1 // loop_header_branch
      %35 = sbr.rel (%p33) target = $region8
    $region5: #{tpu_custom_call.1} parent=1 // loop_body
      %s37 = ssub.s32 %s32, 1
      %s38 = ssub.s32 %s32, 2
      %s45 = sadd.s32 1, %s40
      %p46 = scmp.ge.s32.totalorder %s45, 1
      %s47 = scalar_select %p46, 0, %s45
      %s48 = sadd.s32 1, %s39
      %s49 = scalar_select %p46, %s48, %s39
      %p50 = scmp.ge.s32.totalorder %s49, 2
      %s51 = scalar_select %p50, 0, %s49
      %s52 = ssub.s32 %s39, %s51
      %p53 = scmp.eq.s32.totalorder %s52, 0
      %s55 = sadd.s32 %s54, 1
      %s56 = scalar_select %p53, %s54, %s55
      %p59 = pneg %p53
      %p60 = scmp.eq.s32.totalorder %s32, 1
      %p61 = por %p59, %p60
      %p62 = scmp.ne.s32.totalorder %s54, %s57
      %p63 = scmp.eq.s32.totalorder %s32, 0
      %p64 = por %p62, %p63
      %p65 = scmp.ne.s32.totalorder %s54, %s57
      %p66 = scmp.eq.s32.totalorder %s37, 1
      %p67 = por %p65, %p66
      %p68 = scmp.ne.s32.totalorder %s57, %s58
      %p69 = scmp.eq.s32.totalorder %s37, 0
      %p70 = por %p68, %p69
      %p71 = scmp.ne.s32.totalorder %s57, %s58
      %p72 = scmp.eq.s32.totalorder %s38, 1
      %p73 = por %p71, %p72
      %p75 = scmp.ne.s32.totalorder %s58, %s74
      %p76 = scmp.eq.s32.totalorder %s38, 0
      %p77 = por %p75, %p76
      %s79 = sadd.s32 %s78, 1
      %p82 = scmp.eq.s32.totalorder %s32, 1
      %p83 = scmp.ne.s32.totalorder %s78, %s80
      %p84 = scmp.eq.s32.totalorder %s32, 0
      %p85 = por %p83, %p84
      %p86 = scmp.ne.s32.totalorder %s78, %s80
      %p87 = scmp.eq.s32.totalorder %s37, 1
      %p88 = por %p86, %p87
      %p89 = scmp.ne.s32.totalorder %s80, %s81
      %p90 = scmp.eq.s32.totalorder %s37, 0
      %p91 = por %p89, %p90
      %p92 = scmp.ne.s32.totalorder %s80, %s81
      %p93 = scmp.eq.s32.totalorder %s38, 1
      %p94 = por %p92, %p93
      %p96 = scmp.ne.s32.totalorder %s81, %s95
      %p97 = scmp.eq.s32.totalorder %s38, 0
      %p98 = por %p96, %p97
      %s100 = sadd.s32 %s99, 1
      %p103 = scmp.eq.s32.totalorder %s32, 1
      %p104 = scmp.ne.s32.totalorder %s99, %s101
      %p105 = scmp.eq.s32.totalorder %s32, 0
      %p106 = por %p104, %p105
      %p107 = scmp.ne.s32.totalorder %s99, %s101
      %p108 = scmp.eq.s32.totalorder %s37, 1
      %p109 = por %p107, %p108
      %p110 = scmp.ne.s32.totalorder %s101, %s102
      %p111 = scmp.eq.s32.totalorder %s37, 0
      %p112 = por %p110, %p111
      %p113 = scmp.ne.s32.totalorder %s101, %s102
      %p114 = scmp.eq.s32.totalorder %s38, 1
      %p115 = por %p113, %p114
      %p117 = scmp.ne.s32.totalorder %s102, %s116
      %p118 = scmp.eq.s32.totalorder %s38, 0
      %p119 = por %p117, %p118
      %s121 = sadd.s32 %s120, 1
      %p124 = scmp.eq.s32.totalorder %s32, 1
      %p125 = scmp.ne.s32.totalorder %s120, %s122
      %p126 = scmp.eq.s32.totalorder %s32, 0
      %p127 = por %p125, %p126
      %p128 = scmp.ne.s32.totalorder %s120, %s122
      %p129 = scmp.eq.s32.totalorder %s37, 1
      %p130 = por %p128, %p129
      %p131 = scmp.ne.s32.totalorder %s122, %s123
      %p132 = scmp.eq.s32.totalorder %s37, 0
      %p133 = por %p131, %p132
      %p134 = scmp.ne.s32.totalorder %s122, %s123
      %p135 = scmp.eq.s32.totalorder %s38, 1
      %p136 = por %p134, %p135
      %p138 = scmp.ne.s32.totalorder %s123, %s137
      %p139 = scmp.eq.s32.totalorder %s38, 0
      %p140 = por %p138, %p139
      %s142 = sadd.s32 %s141, 1
      %p145 = scmp.eq.s32.totalorder %s32, 1
      %p146 = scmp.ne.s32.totalorder %s141, %s143
      %p147 = scmp.eq.s32.totalorder %s32, 0
      %p148 = por %p146, %p147
      %p149 = scmp.ne.s32.totalorder %s141, %s143
      %p150 = scmp.eq.s32.totalorder %s37, 1
      %p151 = por %p149, %p150
      %p152 = scmp.ne.s32.totalorder %s143, %s144
      %p153 = scmp.eq.s32.totalorder %s37, 0
      %p154 = por %p152, %p153
      %p155 = scmp.ne.s32.totalorder %s143, %s144
      %p156 = scmp.eq.s32.totalorder %s38, 1
      %p157 = por %p155, %p156
      %p159 = scmp.ne.s32.totalorder %s144, %s158
      %p160 = scmp.eq.s32.totalorder %s38, 0
      %p161 = por %p159, %p160
      %s163 = sadd.s32 %s162, 1
      %p166 = scmp.eq.s32.totalorder %s32, 1
      %p167 = scmp.ne.s32.totalorder %s162, %s164
      %p168 = scmp.eq.s32.totalorder %s32, 0
      %p169 = por %p167, %p168
      %p170 = scmp.ne.s32.totalorder %s162, %s164
      %p171 = scmp.eq.s32.totalorder %s37, 1
      %p172 = por %p170, %p171
      %p173 = scmp.ne.s32.totalorder %s164, %s165
      %p174 = scmp.eq.s32.totalorder %s37, 0
      %p175 = por %p173, %p174
      %p176 = scmp.ne.s32.totalorder %s164, %s165
      %p177 = scmp.eq.s32.totalorder %s38, 1
      %p178 = por %p176, %p177
      %p180 = scmp.ne.s32.totalorder %s165, %s179
      %p181 = scmp.eq.s32.totalorder %s38, 0
      %p182 = por %p180, %p181
      %s184 = sadd.s32 %s183, 1
      %p187 = scmp.eq.s32.totalorder %s32, 1
      %p188 = scmp.ne.s32.totalorder %s183, %s185
      %p189 = scmp.eq.s32.totalorder %s32, 0
      %p190 = por %p188, %p189
      %p191 = scmp.ne.s32.totalorder %s183, %s185
      %p192 = scmp.eq.s32.totalorder %s37, 1
      %p193 = por %p191, %p192
      %p194 = scmp.ne.s32.totalorder %s185, %s186
      %p195 = scmp.eq.s32.totalorder %s37, 0
      %p196 = por %p194, %p195
      %p197 = scmp.ne.s32.totalorder %s185, %s186
      %p198 = scmp.eq.s32.totalorder %s38, 1
      %p199 = por %p197, %p198
      %p201 = scmp.ne.s32.totalorder %s186, %s200
      %p202 = scmp.eq.s32.totalorder %s38, 0
      %p203 = por %p201, %p202
      %s205 = sadd.s32 %s204, 1
      %p208 = scmp.eq.s32.totalorder %s32, 1
      %p209 = scmp.ne.s32.totalorder %s204, %s206
      %p210 = scmp.eq.s32.totalorder %s32, 0
      %p211 = por %p209, %p210
      %p212 = scmp.ne.s32.totalorder %s204, %s206
      %p213 = scmp.eq.s32.totalorder %s37, 1
      %p214 = por %p212, %p213
      %p215 = scmp.ne.s32.totalorder %s206, %s207
      %p216 = scmp.eq.s32.totalorder %s37, 0
      %p217 = por %p215, %p216
      %p218 = scmp.ne.s32.totalorder %s206, %s207
      %p219 = scmp.eq.s32.totalorder %s38, 1
      %p220 = por %p218, %p219
      %p222 = scmp.ne.s32.totalorder %s207, %s221
      %p223 = scmp.eq.s32.totalorder %s38, 0
      %p224 = por %p222, %p223
      %s226 = sadd.s32 %s225, 1
      %p229 = scmp.eq.s32.totalorder %s32, 1
      %p230 = scmp.ne.s32.totalorder %s225, %s227
      %p231 = scmp.eq.s32.totalorder %s32, 0
      %p232 = por %p230, %p231
      %p233 = scmp.ne.s32.totalorder %s225, %s227
      %p234 = scmp.eq.s32.totalorder %s37, 1
      %p235 = por %p233, %p234
      %p236 = scmp.ne.s32.totalorder %s227, %s228
      %p237 = scmp.eq.s32.totalorder %s37, 0
      %p238 = por %p236, %p237
      %p239 = scmp.ne.s32.totalorder %s227, %s228
      %p240 = scmp.eq.s32.totalorder %s38, 1
      %p241 = por %p239, %p240
      %p243 = scmp.ne.s32.totalorder %s228, %s242
      %p244 = scmp.eq.s32.totalorder %s38, 0
      %p245 = por %p243, %p244
      %s247 = sadd.s32 %s246, 1
      %p250 = scmp.eq.s32.totalorder %s32, 1
      %p251 = scmp.ne.s32.totalorder %s246, %s248
      %p252 = scmp.eq.s32.totalorder %s32, 0
      %p253 = por %p251, %p252
      %p254 = scmp.ne.s32.totalorder %s246, %s248
      %p255 = scmp.eq.s32.totalorder %s37, 1
      %p256 = por %p254, %p255
      %p257 = scmp.ne.s32.totalorder %s248, %s249
      %p258 = scmp.eq.s32.totalorder %s37, 0
      %p259 = por %p257, %p258
      %p260 = scmp.ne.s32.totalorder %s248, %s249
      %p261 = scmp.eq.s32.totalorder %s38, 1
      %p262 = por %p260, %p261
      %p264 = scmp.ne.s32.totalorder %s249, %s263
      %p265 = scmp.eq.s32.totalorder %s38, 0
      %p266 = por %p264, %p265
      %s268 = sadd.s32 %s267, 1
      %p271 = scmp.eq.s32.totalorder %s32, 1
      %p272 = scmp.ne.s32.totalorder %s267, %s269
      %p273 = scmp.eq.s32.totalorder %s32, 0
      %p274 = por %p272, %p273
      %p275 = scmp.ne.s32.totalorder %s267, %s269
      %p276 = scmp.eq.s32.totalorder %s37, 1
      %p277 = por %p275, %p276
      %p278 = scmp.ne.s32.totalorder %s269, %s270
      %p279 = scmp.eq.s32.totalorder %s37, 0
      %p280 = por %p278, %p279
      %p281 = scmp.ne.s32.totalorder %s269, %s270
      %p282 = scmp.eq.s32.totalorder %s38, 1
      %p283 = por %p281, %p282
      %p285 = scmp.ne.s32.totalorder %s270, %s284
      %p286 = scmp.eq.s32.totalorder %s38, 0
      %p287 = por %p285, %p286
      %s289 = sadd.s32 %s288, 1
      %p292 = scmp.eq.s32.totalorder %s32, 1
      %p293 = scmp.ne.s32.totalorder %s288, %s290
      %p294 = scmp.eq.s32.totalorder %s32, 0
      %p295 = por %p293, %p294
      %p296 = scmp.ne.s32.totalorder %s288, %s290
      %p297 = scmp.eq.s32.totalorder %s37, 1
      %p298 = por %p296, %p297
      %p299 = scmp.ne.s32.totalorder %s290, %s291
      %p300 = scmp.eq.s32.totalorder %s37, 0
      %p301 = por %p299, %p300
      %p302 = scmp.ne.s32.totalorder %s290, %s291
      %p303 = scmp.eq.s32.totalorder %s38, 1
      %p304 = por %p302, %p303
      %p306 = scmp.ne.s32.totalorder %s291, %s305
      %p307 = scmp.eq.s32.totalorder %s38, 0
      %p308 = por %p306, %p307
      %s310 = sadd.s32 %s309, 1
      %p313 = scmp.eq.s32.totalorder %s32, 1
      %p314 = scmp.ne.s32.totalorder %s309, %s311
      %p315 = scmp.eq.s32.totalorder %s32, 0
      %p316 = por %p314, %p315
      %p317 = scmp.ne.s32.totalorder %s309, %s311
      %p318 = scmp.eq.s32.totalorder %s37, 1
      %p319 = por %p317, %p318
      %p320 = scmp.ne.s32.totalorder %s311, %s312
      %p321 = scmp.eq.s32.totalorder %s37, 0
      %p322 = por %p320, %p321
      %p323 = scmp.ne.s32.totalorder %s311, %s312
      %p324 = scmp.eq.s32.totalorder %s38, 1
      %p325 = por %p323, %p324
      %p327 = scmp.ne.s32.totalorder %s312, %s326
      %p328 = scmp.eq.s32.totalorder %s38, 0
      %p329 = por %p327, %p328
      %s331 = sadd.s32 %s330, 1
      %p334 = scmp.eq.s32.totalorder %s32, 1
      %p335 = scmp.ne.s32.totalorder %s330, %s332
      %p336 = scmp.eq.s32.totalorder %s32, 0
      %p337 = por %p335, %p336
      %p338 = scmp.ne.s32.totalorder %s330, %s332
      %p339 = scmp.eq.s32.totalorder %s37, 1
      %p340 = por %p338, %p339
      %p341 = scmp.ne.s32.totalorder %s332, %s333
      %p342 = scmp.eq.s32.totalorder %s37, 0
      %p343 = por %p341, %p342
      %p344 = scmp.ne.s32.totalorder %s332, %s333
      %p345 = scmp.eq.s32.totalorder %s38, 1
      %p346 = por %p344, %p345
      %p348 = scmp.ne.s32.totalorder %s333, %s347
      %p349 = scmp.eq.s32.totalorder %s38, 0
      %p350 = por %p348, %p349
      %s352 = sadd.s32 %s351, 1
      %p355 = scmp.eq.s32.totalorder %s32, 1
      %p356 = scmp.ne.s32.totalorder %s351, %s353
      %p357 = scmp.eq.s32.totalorder %s32, 0
      %p358 = por %p356, %p357
      %p359 = scmp.ne.s32.totalorder %s351, %s353
      %p360 = scmp.eq.s32.totalorder %s37, 1
      %p361 = por %p359, %p360
      %p362 = scmp.ne.s32.totalorder %s353, %s354
      %p363 = scmp.eq.s32.totalorder %s37, 0
      %p364 = por %p362, %p363
      %p365 = scmp.ne.s32.totalorder %s353, %s354
      %p366 = scmp.eq.s32.totalorder %s38, 1
      %p367 = por %p365, %p366
      %p369 = scmp.ne.s32.totalorder %s354, %s368
      %p370 = scmp.eq.s32.totalorder %s38, 0
      %p371 = por %p369, %p370
      %s373 = sadd.s32 %s372, 1
      %p376 = scmp.eq.s32.totalorder %s32, 1
      %p377 = scmp.ne.s32.totalorder %s372, %s374
      %p378 = scmp.eq.s32.totalorder %s32, 0
      %p379 = por %p377, %p378
      %p380 = scmp.ne.s32.totalorder %s372, %s374
      %p381 = scmp.eq.s32.totalorder %s37, 1
      %p382 = por %p380, %p381
      %p383 = scmp.ne.s32.totalorder %s374, %s375
      %p384 = scmp.eq.s32.totalorder %s37, 0
      %p385 = por %p383, %p384
      %p386 = scmp.ne.s32.totalorder %s374, %s375
      %p387 = scmp.eq.s32.totalorder %s38, 1
      %p388 = por %p386, %p387
      %p390 = scmp.ne.s32.totalorder %s375, %s389
      %p391 = scmp.eq.s32.totalorder %s38, 0
      %p392 = por %p390, %p391
      %s394 = sadd.s32 %s393, 1
      %p397 = scmp.eq.s32.totalorder %s32, 1
      %p398 = scmp.ne.s32.totalorder %s393, %s395
      %p399 = scmp.eq.s32.totalorder %s32, 0
      %p400 = por %p398, %p399
      %p401 = scmp.ne.s32.totalorder %s393, %s395
      %p402 = scmp.eq.s32.totalorder %s37, 1
      %p403 = por %p401, %p402
      %p404 = scmp.ne.s32.totalorder %s395, %s396
      %p405 = scmp.eq.s32.totalorder %s37, 0
      %p406 = por %p404, %p405
      %p407 = scmp.ne.s32.totalorder %s395, %s396
      %p408 = scmp.eq.s32.totalorder %s38, 1
      %p409 = por %p407, %p408
      %p411 = scmp.ne.s32.totalorder %s396, %s410
      %p412 = scmp.eq.s32.totalorder %s38, 0
      %p413 = por %p411, %p412
      %s414 = ssub.s32 %s39, %s51
      %s415 = ssub.s32 %s40, %s47
      %s416 = sor.u32 %s414, %s415
      %p417 = scmp.eq.s32.totalorder %s416, 0
      %s419 = sadd.s32 %s418, 1
      %s420 = scalar_select %p417, %s418, %s419
      %p423 = pneg %p417
      %p424 = scmp.eq.s32.totalorder %s32, 1
      %p425 = por %p423, %p424
      %p426 = scmp.ne.s32.totalorder %s418, %s421
      %p427 = scmp.eq.s32.totalorder %s32, 0
      %p428 = por %p426, %p427
      %p429 = scmp.ne.s32.totalorder %s418, %s421
      %p430 = scmp.eq.s32.totalorder %s37, 1
      %p431 = por %p429, %p430
      %p432 = scmp.ne.s32.totalorder %s421, %s422
      %p433 = scmp.eq.s32.totalorder %s37, 0
      %p434 = por %p432, %p433
      %p435 = scmp.ne.s32.totalorder %s421, %s422
      %p436 = scmp.eq.s32.totalorder %s38, 1
      %p437 = por %p435, %p436
      %p439 = scmp.ne.s32.totalorder %s422, %s438
      %p440 = scmp.eq.s32.totalorder %s38, 0
      %p441 = por %p439, %p440
      %p442 = scmp.le.s32.totalorder 1, %s32
      %p443 = scmp.lt.s32.totalorder %s32, 3
      %p444 = pnand %p442, %p443
      %p445 = pneg %p444
      // Predicated region
      $region9: #{tpu_custom_call.1} parent=5 // pred_check
        _
      $region10: #{tpu_custom_call.1} parent=5 // pred_check_branch
        %447 = sbr.rel (%p444) target = $region12
      $region11: #{tpu_custom_call.1} parent=5 // pred_region
        %s448 = ssub.s32 %s32, 1
        // Predicated region
        $region13: #{tpu_custom_call.1} parent=11 // pred_check
          %p449 = pneg %p91
        $region14: #{tpu_custom_call.1} parent=11 // pred_check_branch
          %451 = sbr.rel (%p449) target = $region16
        $region15: #{tpu_custom_call.1} parent=11 // pred_region
          %s453 = ssub.s32 4096, 4096
          %454 = vsyncadd [#allocation8], %s453
          %s455 = sshll.u32 [#allocation7], 4
          %s456 = int_to_ptr.vmem [resolvable:$true] %s455
          %461 = dma.hbm_to_vmem [thread:$0]  %s1, 4096, %s456, [#allocation8], 256, 256, 16
        $region16: #{tpu_custom_call.1} parent=11 // pred_fallthru
          _
        // Predicated region
        $region17: #{tpu_custom_call.1} parent=11 // pred_check
          %p462 = pneg %p112
        $region18: #{tpu_custom_call.1} parent=11 // pred_check_branch
          %464 = sbr.rel (%p462) target = $region20
        $region19: #{tpu_custom_call.1} parent=11 // pred_region
          _
        $region20: #{tpu_custom_call.1} parent=11 // pred_fallthru
          _
        // Predicated region
        $region21: #{tpu_custom_call.1} parent=11 // pred_check
          %p465 = pneg %p133
        $region22: #{tpu_custom_call.1} parent=11 // pred_check_branch
          %467 = sbr.rel (%p465) target = $region24
        $region23: #{tpu_custom_call.1} parent=11 // pred_region
          %s469 = ssub.s32 4096, 4096
          %470 = vsyncadd [#allocation8], %s469
          %s471 = sshll.u32 [#allocation9], 4
          %s472 = int_to_ptr.vmem [resolvable:$true] %s471
          %477 = dma.hbm_to_vmem [thread:$0]  %s3, 4096, %s472, [#allocation8], 256, 256, 16
        $region24: #{tpu_custom_call.1} parent=11 // pred_fallthru
          _
        // Predicated region
        $region25: #{tpu_custom_call.1} parent=11 // pred_check
          %p478 = pneg %p154
        $region26: #{tpu_custom_call.1} parent=11 // pred_check_branch
          %480 = sbr.rel (%p478) target = $region28
        $region27: #{tpu_custom_call.1} parent=11 // pred_region
          _
        $region28: #{tpu_custom_call.1} parent=11 // pred_fallthru
          _
        // Predicated region
        $region29: #{tpu_custom_call.1} parent=11 // pred_check
          %p481 = pneg %p175
        $region30: #{tpu_custom_call.1} parent=11 // pred_check_branch
          %483 = sbr.rel (%p481) target = $region32
        $region31: #{tpu_custom_call.1} parent=11 // pred_region
          %s485 = ssub.s32 4096, 4096
          %486 = vsyncadd [#allocation11], %s485
          %s487 = sshll.u32 [#allocation10], 4
          %s488 = int_to_ptr.vmem [resolvable:$true] %s487
          %493 = dma.hbm_to_vmem [thread:$0]  %s5, 4096, %s488, [#allocation11], 256, 256, 16
        $region32: #{tpu_custom_call.1} parent=11 // pred_fallthru
          _
        // Predicated region
        $region33: #{tpu_custom_call.1} parent=11 // pred_check
          %p494 = pneg %p196
        $region34: #{tpu_custom_call.1} parent=11 // pred_check_branch
          %496 = sbr.rel (%p494) target = $region36
        $region35: #{tpu_custom_call.1} parent=11 // pred_region
          _
        $region36: #{tpu_custom_call.1} parent=11 // pred_fallthru
          _
        // Predicated region
        $region37: #{tpu_custom_call.1} parent=11 // pred_check
          %p497 = pneg %p217
        $region38: #{tpu_custom_call.1} parent=11 // pred_check_branch
          %499 = sbr.rel (%p497) target = $region40
        $region39: #{tpu_custom_call.1} parent=11 // pred_region
          %s501 = ssub.s32 4096, 4096
          %502 = vsyncadd [#allocation11], %s501
          %s503 = sshll.u32 [#allocation12], 4
          %s504 = int_to_ptr.vmem [resolvable:$true] %s503
          %509 = dma.hbm_to_vmem [thread:$0]  %s7, 4096, %s504, [#allocation11], 64, 64, 4
        $region40: #{tpu_custom_call.1} parent=11 // pred_fallthru
          _
        // Predicated region
        $region41: #{tpu_custom_call.1} parent=11 // pred_check
          %p510 = pneg %p238
        $region42: #{tpu_custom_call.1} parent=11 // pred_check_branch
          %512 = sbr.rel (%p510) target = $region44
        $region43: #{tpu_custom_call.1} parent=11 // pred_region
          _
        $region44: #{tpu_custom_call.1} parent=11 // pred_fallthru
          _
        // Predicated region
        $region45: #{tpu_custom_call.1} parent=11 // pred_check
          %p513 = pneg %p259
        $region46: #{tpu_custom_call.1} parent=11 // pred_check_branch
          %515 = sbr.rel (%p513) target = $region48
        $region47: #{tpu_custom_call.1} parent=11 // pred_region
          %s517 = ssub.s32 1024, 1024
          %518 = vsyncadd [#allocation14], %s517
          %s519 = sshll.u32 [#allocation13], 4
          %s520 = int_to_ptr.vmem [resolvable:$true] %s519
          %525 = dma.hbm_to_vmem [thread:$0]  %s9, 1024, %s520, [#allocation14], 64, 64, 4
        $region48: #{tpu_custom_call.1} parent=11 // pred_fallthru
          _
        // Predicated region
        $region49: #{tpu_custom_call.1} parent=11 // pred_check
          %p526 = pneg %p280
        $region50: #{tpu_custom_call.1} parent=11 // pred_check_branch
          %528 = sbr.rel (%p526) target = $region52
        $region51: #{tpu_custom_call.1} parent=11 // pred_region
          _
        $region52: #{tpu_custom_call.1} parent=11 // pred_fallthru
          _
        // Predicated region
        $region53: #{tpu_custom_call.1} parent=11 // pred_check
          %p529 = pneg %p301
        $region54: #{tpu_custom_call.1} parent=11 // pred_check_branch
          %531 = sbr.rel (%p529) target = $region56
        $region55: #{tpu_custom_call.1} parent=11 // pred_region
          %s533 = ssub.s32 1024, 1024
          %534 = vsyncadd [#allocation14], %s533
          %s535 = sshll.u32 [#allocation15], 4
          %s536 = int_to_ptr.vmem [resolvable:$true] %s535
          %541 = dma.hbm_to_vmem [thread:$0]  %s11, 1024, %s536, [#allocation14], 64, 64, 4
        $region56: #{tpu_custom_call.1} parent=11 // pred_fallthru
          _
        // Predicated region
        $region57: #{tpu_custom_call.1} parent=11 // pred_check
          %p542 = pneg %p322
        $region58: #{tpu_custom_call.1} parent=11 // pred_check_branch
          %544 = sbr.rel (%p542) target = $region60
        $region59: #{tpu_custom_call.1} parent=11 // pred_region
          _
        $region60: #{tpu_custom_call.1} parent=11 // pred_fallthru
          _
        // Predicated region
        $region61: #{tpu_custom_call.1} parent=11 // pred_check
          %p545 = pneg %p343
        $region62: #{tpu_custom_call.1} parent=11 // pred_check_branch
          %547 = sbr.rel (%p545) target = $region64
        $region63: #{tpu_custom_call.1} parent=11 // pred_region
          _
        $region64: #{tpu_custom_call.1} parent=11 // pred_fallthru
          _
        // Predicated region
        $region65: #{tpu_custom_call.1} parent=11 // pred_check
          %p548 = pneg %p364
        $region66: #{tpu_custom_call.1} parent=11 // pred_check_branch
          %550 = sbr.rel (%p548) target = $region68
        $region67: #{tpu_custom_call.1} parent=11 // pred_region
          _
        $region68: #{tpu_custom_call.1} parent=11 // pred_fallthru
          _
        // Predicated region
        $region69: #{tpu_custom_call.1} parent=11 // pred_check
          %p551 = pneg %p385
        $region70: #{tpu_custom_call.1} parent=11 // pred_check_branch
          %553 = sbr.rel (%p551) target = $region72
        $region71: #{tpu_custom_call.1} parent=11 // pred_region
          _
        $region72: #{tpu_custom_call.1} parent=11 // pred_fallthru
          _
        // Predicated region
        $region73: #{tpu_custom_call.1} parent=11 // pred_check
          %p554 = pneg %p406
        $region74: #{tpu_custom_call.1} parent=11 // pred_check_branch
          %556 = sbr.rel (%p554) target = $region76
        $region75: #{tpu_custom_call.1} parent=11 // pred_region
          _
        $region76: #{tpu_custom_call.1} parent=11 // pred_fallthru
          _
      $region12: #{tpu_custom_call.1} parent=5 // pred_fallthru
        _
      %p557 = scmp.lt.s32.totalorder %s32, 2
      // Predicated region
      $region77: #{tpu_custom_call.1} parent=5 // pred_check
        %p558 = pneg %p557
      $region78: #{tpu_custom_call.1} parent=5 // pred_check_branch
        %560 = sbr.rel (%p558) target = $region80
      $region79: #{tpu_custom_call.1} parent=5 // pred_region
        // Predicated region
        $region81: #{tpu_custom_call.1} parent=79 // pred_check
          %p561 = pneg %p64
        $region82: #{tpu_custom_call.1} parent=79 // pred_check_branch
          %563 = sbr.rel (%p561) target = $region84
        $region83: #{tpu_custom_call.1} parent=79 // pred_region
          %s564 = sand.u32 %s54, 1
          %s565 = scalar_lea.sflag [#allocation5], %s564
          %s566 = sand.u32 %s54, 1
          %s567 = smul.addr %s566, 8
          %s568 = scalar_lea.vmem [#allocation4], %s567
          %s570 = ssub.s32 128, 128
          %571 = vsyncadd %s565, %s570
          %s572 = smul.addr %s39, 128
          %s573 = scalar_lea.hbm %s0, %s572
          %s575 = sshll.u32 %s568, 4
          %s576 = int_to_ptr.vmem [resolvable:$true] %s575
          %578 = dma.hbm_to_vmem [thread:$0]  %s573, 128, %s576, %s565
        $region84: #{tpu_custom_call.1} parent=79 // pred_fallthru
          _
      $region80: #{tpu_custom_call.1} parent=5 // pred_fallthru
        _
      %p579 = scmp.le.s32.totalorder 1, %s32
      %p580 = scmp.lt.s32.totalorder %s32, 3
      %p581 = pnand %p579, %p580
      %p582 = pneg %p581
      // Predicated region
      $region85: #{tpu_custom_call.1} parent=5 // pred_check
        _
      $region86: #{tpu_custom_call.1} parent=5 // pred_check_branch
        %584 = sbr.rel (%p581) target = $region88
      $region87: #{tpu_custom_call.1} parent=5 // pred_region
        %s585 = ssub.s32 %s32, 1
        %s586 = sand.u32 %s57, 1
        %s587 = scalar_lea.sflag [#allocation5], %s586
        %s588 = sand.u32 %s57, 1
        %s589 = smul.addr %s588, 8
        %s590 = scalar_lea.vmem [#allocation4], %s589
        // Predicated region
        $region89: #{tpu_custom_call.1} parent=87 // pred_check
          %p591 = pneg %p70
        $region90: #{tpu_custom_call.1} parent=87 // pred_check_branch
          %593 = sbr.rel (%p591) target = $region92
        $region91: #{tpu_custom_call.1} parent=87 // pred_region
          %594 = dma.done %s587, 128
        $region92: #{tpu_custom_call.1} parent=87 // pred_fallthru
          _
        // Predicated region
        $region93: #{tpu_custom_call.1} parent=87 // pred_check
          %p595 = pneg %p91
        $region94: #{tpu_custom_call.1} parent=87 // pred_check_branch
          %597 = sbr.rel (%p595) target = $region96
        $region95: #{tpu_custom_call.1} parent=87 // pred_region
          %598 = dma.done [#allocation8], 4096
        $region96: #{tpu_custom_call.1} parent=87 // pred_fallthru
          _
        // Predicated region
        $region97: #{tpu_custom_call.1} parent=87 // pred_check
          %p599 = pneg %p133
        $region98: #{tpu_custom_call.1} parent=87 // pred_check_branch
          %601 = sbr.rel (%p599) target = $region100
        $region99: #{tpu_custom_call.1} parent=87 // pred_region
          %602 = dma.done [#allocation8], 4096
        $region100: #{tpu_custom_call.1} parent=87 // pred_fallthru
          _
        // Predicated region
        $region101: #{tpu_custom_call.1} parent=87 // pred_check
          %p603 = pneg %p175
        $region102: #{tpu_custom_call.1} parent=87 // pred_check_branch
          %605 = sbr.rel (%p603) target = $region104
        $region103: #{tpu_custom_call.1} parent=87 // pred_region
          %606 = dma.done [#allocation11], 4096
        $region104: #{tpu_custom_call.1} parent=87 // pred_fallthru
          _
        // Predicated region
        $region105: #{tpu_custom_call.1} parent=87 // pred_check
          %p607 = pneg %p217
        $region106: #{tpu_custom_call.1} parent=87 // pred_check_branch
          %609 = sbr.rel (%p607) target = $region108
        $region107: #{tpu_custom_call.1} parent=87 // pred_region
          %610 = dma.done [#allocation11], 4096
        $region108: #{tpu_custom_call.1} parent=87 // pred_fallthru
          _
        // Predicated region
        $region109: #{tpu_custom_call.1} parent=87 // pred_check
          %p611 = pneg %p259
        $region110: #{tpu_custom_call.1} parent=87 // pred_check_branch
          %613 = sbr.rel (%p611) target = $region112
        $region111: #{tpu_custom_call.1} parent=87 // pred_region
          %614 = dma.done [#allocation14], 1024
        $region112: #{tpu_custom_call.1} parent=87 // pred_fallthru
          _
        // Predicated region
        $region113: #{tpu_custom_call.1} parent=87 // pred_check
          %p615 = pneg %p301
        $region114: #{tpu_custom_call.1} parent=87 // pred_check_branch
          %617 = sbr.rel (%p615) target = $region116
        $region115: #{tpu_custom_call.1} parent=87 // pred_region
          %618 = dma.done [#allocation14], 1024
        $region116: #{tpu_custom_call.1} parent=87 // pred_fallthru
          _
        %s619 = sand.u32 %s57, 1
        %s620 = scalar_lea.sflag [#allocation5], %s619
        %s621 = sand.u32 %s57, 1
        %s622 = smul.addr %s621, 8
        %s623 = scalar_lea.vmem [#allocation4], %s622
        %p624 = pneg %p70
        %p625 = pneg %p67
        %p626 = pneg %p91
        %p627 = pneg %p88
        %p628 = pneg %p112
        %p629 = pneg %p109
        %p630 = pneg %p133
        %p631 = pneg %p130
        %p632 = pneg %p154
        %p633 = pneg %p151
        %p634 = pneg %p175
        %p635 = pneg %p172
        %p636 = pneg %p196
        %p637 = pneg %p193
        %p638 = pneg %p217
        %p639 = pneg %p214
        %p640 = pneg %p238
        %p641 = pneg %p235
        %p642 = pneg %p259
        %p643 = pneg %p256
        %p644 = pneg %p280
        %p645 = pneg %p277
        %p646 = pneg %p301
        %p647 = pneg %p298
        %p648 = pneg %p322
        %p649 = pneg %p319
        %p650 = pneg %p343
        %p651 = pneg %p340
        %p652 = pneg %p364
        %p653 = pneg %p361
        %p654 = pneg %p385
        %p655 = pneg %p382
        %p656 = pneg %p406
        %p657 = pneg %p403
        %p658 = pneg %p434
        %p659 = pneg %p431
        %s660 = sand.u32 %s421, 1
        %s661 = scalar_lea.sflag [#allocation6], %s660
        %s662 = sand.u32 %s421, 1
        %s663 = smul.addr %s662, 8
        %s664 = scalar_lea.vmem [#allocation16], %s663
        %p666 = scmp.eq.s32.totalorder %s42, 0
        // Predicated region
        $region117: #{tpu_custom_call.1} parent=87 // pred_check
          %p667 = pneg %p666
        $region118: #{tpu_custom_call.1} parent=87 // pred_check_branch
          %669 = sbr.rel (%p667) target = $region120
        $region119: #{tpu_custom_call.1} parent=87 // pred_region
          %v670 = vld [vmem:[%s590] sm:$0xff]
          %v671 = vpack.c.bf16 %v670, %v670
          %v672 = vld [vmem:[#allocation9] sm:$0xff]
          %v673 = vld [vmem:[#allocation9 + $0x8] sm:$0xff]
          %v674 = vld [vmem:[#allocation9 + $0x10] sm:$0xff]
          %v675 = vld [vmem:[#allocation9 + $0x18] sm:$0xff]
          %v676 = vld [vmem:[#allocation9 + $0x20] sm:$0xff]
          %v677 = vld [vmem:[#allocation9 + $0x28] sm:$0xff]
          %v678 = vld [vmem:[#allocation9 + $0x30] sm:$0xff]
          %v679 = vld [vmem:[#allocation9 + $0x38] sm:$0xff]
          %v680 = vld [vmem:[#allocation9 + $0x40] sm:$0xff]
          %v681 = vld [vmem:[#allocation9 + $0x48] sm:$0xff]
          %v682 = vld [vmem:[#allocation9 + $0x50] sm:$0xff]
          %v683 = vld [vmem:[#allocation9 + $0x58] sm:$0xff]
          %v684 = vld [vmem:[#allocation9 + $0x60] sm:$0xff]
          %v685 = vld [vmem:[#allocation9 + $0x68] sm:$0xff]
          %v686 = vld [vmem:[#allocation9 + $0x70] sm:$0xff]
          %v687 = vld [vmem:[#allocation9 + $0x78] sm:$0xff]
          %v688 = vld [vmem:[#allocation9 + $0x80] sm:$0xff]
          %v689 = vld [vmem:[#allocation9 + $0x88] sm:$0xff]
          %v690 = vld [vmem:[#allocation9 + $0x90] sm:$0xff]
          %v691 = vld [vmem:[#allocation9 + $0x98] sm:$0xff]
          %v692 = vld [vmem:[#allocation9 + $0xa0] sm:$0xff]
          %v693 = vld [vmem:[#allocation9 + $0xa8] sm:$0xff]
          %v694 = vld [vmem:[#allocation9 + $0xb0] sm:$0xff]
          %v695 = vld [vmem:[#allocation9 + $0xb8] sm:$0xff]
          %v696 = vld [vmem:[#allocation9 + $0xc0] sm:$0xff]
          %v697 = vld [vmem:[#allocation9 + $0xc8] sm:$0xff]
          %v698 = vld [vmem:[#allocation9 + $0xd0] sm:$0xff]
          %v699 = vld [vmem:[#allocation9 + $0xd8] sm:$0xff]
          %v700 = vld [vmem:[#allocation9 + $0xe0] sm:$0xff]
          %v701 = vld [vmem:[#allocation9 + $0xe8] sm:$0xff]
          %v702 = vld [vmem:[#allocation9 + $0xf0] sm:$0xff]
          %v703 = vld [vmem:[#allocation9 + $0xf8] sm:$0xff]
          %v704 = vld [vmem:[%s4] sm:$0xf]
          %v706 = vlaneseq
          %v707 = vshrl.u32 %v706, 7
          %v708 = vsub.s32 0, %v707
          %v709 = vrot.slane %v704, %v708
          %v710 = vlaneseq
          %v711 = vshrl.u32 %v710, 7
          %v712 = vsub.s32 1, %v711
          %v713 = vrot.slane %v704, %v712
          %v714 = vlaneseq
          %v715 = vshrl.u32 %v714, 7
          %v716 = vsub.s32 2, %v715
          %v717 = vrot.slane %v704, %v716
          %v718 = vlaneseq
          %v719 = vshrl.u32 %v718, 7
          %v720 = vsub.s32 3, %v719
          %v721 = vrot.slane %v704, %v720
          %v758 = vunpack.c.l.b16 %v672
          %v759 = vunpack.c.h.b16 %v672
          %v760 = vunpack.c.l.b16 %v673
          %v761 = vunpack.c.h.b16 %v673
          %v762 = vunpack.c.l.b16 %v674
          %v763 = vunpack.c.h.b16 %v674
          %v764 = vunpack.c.l.b16 %v675
          %v765 = vunpack.c.h.b16 %v675
          %v766 = vunpack.c.l.b16 %v676
          %v767 = vunpack.c.h.b16 %v676
          %v768 = vunpack.c.l.b16 %v677
          %v769 = vunpack.c.h.b16 %v677
          %v770 = vunpack.c.l.b16 %v678
          %v771 = vunpack.c.h.b16 %v678
          %v772 = vunpack.c.l.b16 %v679
          %v773 = vunpack.c.h.b16 %v679
          %v774 = vunpack.c.l.b16 %v680
          %v775 = vunpack.c.h.b16 %v680
          %v776 = vunpack.c.l.b16 %v681
          %v777 = vunpack.c.h.b16 %v681
          %v778 = vunpack.c.l.b16 %v682
          %v779 = vunpack.c.h.b16 %v682
          %v780 = vunpack.c.l.b16 %v683
          %v781 = vunpack.c.h.b16 %v683
          %v782 = vunpack.c.l.b16 %v684
          %v783 = vunpack.c.h.b16 %v684
          %v784 = vunpack.c.l.b16 %v685
          %v785 = vunpack.c.h.b16 %v685
          %v786 = vunpack.c.l.b16 %v686
          %v787 = vunpack.c.h.b16 %v686
          %v788 = vunpack.c.l.b16 %v687
          %v789 = vunpack.c.h.b16 %v687
          %v790 = vunpack.c.l.b16 %v688
          %v791 = vunpack.c.h.b16 %v688
          %v792 = vunpack.c.l.b16 %v689
          %v793 = vunpack.c.h.b16 %v689
          %v794 = vunpack.c.l.b16 %v690
          %v795 = vunpack.c.h.b16 %v690
          %v796 = vunpack.c.l.b16 %v691
          %v797 = vunpack.c.h.b16 %v691
          %v798 = vunpack.c.l.b16 %v692
          %v799 = vunpack.c.h.b16 %v692
          %v800 = vunpack.c.l.b16 %v693
          %v801 = vunpack.c.h.b16 %v693
          %v802 = vunpack.c.l.b16 %v694
          %v803 = vunpack.c.h.b16 %v694
          %v804 = vunpack.c.l.b16 %v695
          %v805 = vunpack.c.h.b16 %v695
          %v806 = vunpack.c.l.b16 %v696
          %v807 = vunpack.c.h.b16 %v696
          %v808 = vunpack.c.l.b16 %v697
          %v809 = vunpack.c.h.b16 %v697
          %v810 = vunpack.c.l.b16 %v698
          %v811 = vunpack.c.h.b16 %v698
          %v812 = vunpack.c.l.b16 %v699
          %v813 = vunpack.c.h.b16 %v699
          %v814 = vunpack.c.l.b16 %v700
          %v815 = vunpack.c.h.b16 %v700
          %v816 = vunpack.c.l.b16 %v701
          %v817 = vunpack.c.h.b16 %v701
          %v818 = vunpack.c.l.b16 %v702
          %v819 = vunpack.c.h.b16 %v702
          %v820 = vunpack.c.l.b16 %v703
          %v821 = vunpack.c.h.b16 %v703
          %v822 = vpack.c.b16 %v762, %v758
          %v823 = vpack.c.b16 %v763, %v759
          %v824 = vpack.c.b16 %v764, %v760
          %v825 = vpack.c.b16 %v765, %v761
          %v826 = vpack.c.b16 %v770, %v766
          %v827 = vpack.c.b16 %v771, %v767
          %v828 = vpack.c.b16 %v772, %v768
          %v829 = vpack.c.b16 %v773, %v769
          %v830 = vpack.c.b16 %v778, %v774
          %v831 = vpack.c.b16 %v779, %v775
          %v832 = vpack.c.b16 %v780, %v776
          %v833 = vpack.c.b16 %v781, %v777
          %v834 = vpack.c.b16 %v786, %v782
          %v835 = vpack.c.b16 %v787, %v783
          %v836 = vpack.c.b16 %v788, %v784
          %v837 = vpack.c.b16 %v789, %v785
          %v838 = vpack.c.b16 %v794, %v790
          %v839 = vpack.c.b16 %v795, %v791
          %v840 = vpack.c.b16 %v796, %v792
          %v841 = vpack.c.b16 %v797, %v793
          %v842 = vpack.c.b16 %v802, %v798
          %v843 = vpack.c.b16 %v803, %v799
          %v844 = vpack.c.b16 %v804, %v800
          %v845 = vpack.c.b16 %v805, %v801
          %v846 = vpack.c.b16 %v810, %v806
          %v847 = vpack.c.b16 %v811, %v807
          %v848 = vpack.c.b16 %v812, %v808
          %v849 = vpack.c.b16 %v813, %v809
          %v850 = vpack.c.b16 %v818, %v814
          %v851 = vpack.c.b16 %v819, %v815
          %v852 = vpack.c.b16 %v820, %v816
          %v853 = vpack.c.b16 %v821, %v817
          %886 = vmatprep.subr.bf16.mxu0 %v823
          %887 = vmatpush1.bf16.msra.mxu0 %v822
          %888 = vmatprep.subr.bf16.mxu0 %v827
          %889 = vmatpush1.bf16.msra.mxu0 %v826
          %890 = vmatprep.subr.bf16.mxu0 %v831
          %891 = vmatpush1.bf16.msra.mxu0 %v830
          %892 = vmatprep.subr.bf16.mxu0 %v835
          %893 = vmatpush1.bf16.msra.mxu0 %v834
          %894 = vmatprep.subr.bf16.mxu0 %v839
          %895 = vmatpush1.bf16.msra.mxu0 %v838
          %896 = vmatprep.subr.bf16.mxu0 %v843
          %897 = vmatpush1.bf16.msra.mxu0 %v842
          %898 = vmatprep.subr.bf16.mxu0 %v847
          %899 = vmatpush1.bf16.msra.mxu0 %v846
          %900 = vmatprep.subr.bf16.mxu0 %v851
          %901 = vmatpush1.bf16.msra.mxu0 %v850
          %902 = vmatprep.subr.bf16.mxu0 0
          %903 = vmatpush1.bf16.msra.mxu0 0
          %904 = vmatprep.subr.bf16.mxu0 0
          %905 = vmatpush1.bf16.msra.mxu0 0
          %906 = vmatprep.subr.bf16.mxu0 0
          %907 = vmatpush1.bf16.msra.mxu0 0
          %908 = vmatprep.subr.bf16.mxu0 0
          %909 = vmatpush1.bf16.msra.mxu0 0
          %910 = vmatprep.subr.bf16.mxu0 0
          %911 = vmatpush1.bf16.msra.mxu0 0
          %912 = vmatprep.subr.bf16.mxu0 0
          %913 = vmatpush1.bf16.msra.mxu0 0
          %914 = vmatprep.subr.bf16.mxu0 0
          %915 = vmatpush1.bf16.msra.mxu0 0
          %916 = vmatprep.subr.bf16.mxu0 0
          %917 = vmatpush1.bf16.msra.mxu0 0
          %918 = vmatprep.mubr.bf16.mxu0 0
          %919 = vmatmul.mubr.bf16.gmra.mrb[0].mxu0 %v671
          %v920 = vpop.f32.mrb[0].mxu0
          %v921 = vadd.f32 %v709, %v920
          %v922 = vpop.f32.mrb[0].mxu0
          %v923 = vadd.f32 %v713, %v922
          %v924 = vpop.f32.mrb[0].mxu0
          %v925 = vpop.f32.mrb[0].mxu0
          %926 = vdwg.mxu0
          %927 = vmatprep.subr.bf16.mxu0 %v825
          %928 = vmatpush1.bf16.msra.mxu0 %v824
          %929 = vmatprep.subr.bf16.mxu0 %v829
          %930 = vmatpush1.bf16.msra.mxu0 %v828
          %931 = vmatprep.subr.bf16.mxu0 %v833
          %932 = vmatpush1.bf16.msra.mxu0 %v832
          %933 = vmatprep.subr.bf16.mxu0 %v837
          %934 = vmatpush1.bf16.msra.mxu0 %v836
          %935 = vmatprep.subr.bf16.mxu0 %v841
          %936 = vmatpush1.bf16.msra.mxu0 %v840
          %937 = vmatprep.subr.bf16.mxu0 %v845
          %938 = vmatpush1.bf16.msra.mxu0 %v844
          %939 = vmatprep.subr.bf16.mxu0 %v849
          %940 = vmatpush1.bf16.msra.mxu0 %v848
          %941 = vmatprep.subr.bf16.mxu0 %v853
          %942 = vmatpush1.bf16.msra.mxu0 %v852
          %943 = vmatprep.subr.bf16.mxu0 0
          %944 = vmatpush1.bf16.msra.mxu0 0
          %945 = vmatprep.subr.bf16.mxu0 0
          %946 = vmatpush1.bf16.msra.mxu0 0
          %947 = vmatprep.subr.bf16.mxu0 0
          %948 = vmatpush1.bf16.msra.mxu0 0
          %949 = vmatprep.subr.bf16.mxu0 0
          %950 = vmatpush1.bf16.msra.mxu0 0
          %951 = vmatprep.subr.bf16.mxu0 0
          %952 = vmatpush1.bf16.msra.mxu0 0
          %953 = vmatprep.subr.bf16.mxu0 0
          %954 = vmatpush1.bf16.msra.mxu0 0
          %955 = vmatprep.subr.bf16.mxu0 0
          %956 = vmatpush1.bf16.msra.mxu0 0
          %957 = vmatprep.subr.bf16.mxu0 0
          %958 = vmatpush1.bf16.msra.mxu0 0
          %959 = vmatprep.mubr.bf16.mxu0 0
          %960 = vmatmul.mubr.bf16.gmra.mrb[0].mxu0 %v671
          %v961 = vpop.f32.mrb[0].mxu0
          %v962 = vadd.f32 %v717, %v961
          %v963 = vpop.f32.mrb[0].mxu0
          %v964 = vadd.f32 %v721, %v963
          %v965 = vpop.f32.mrb[0].mxu0
          %v966 = vpop.f32.mrb[0].mxu0
          %967 = vdwg.mxu0
          %v968 = vld [vmem:[#allocation10] sm:$0xff]
          %v969 = vld [vmem:[#allocation10 + $0x8] sm:$0xff]
          %v970 = vld [vmem:[#allocation10 + $0x10] sm:$0xff]
          %v971 = vld [vmem:[#allocation10 + $0x18] sm:$0xff]
          %v972 = vld [vmem:[#allocation10 + $0x20] sm:$0xff]
          %v973 = vld [vmem:[#allocation10 + $0x28] sm:$0xff]
          %v974 = vld [vmem:[#allocation10 + $0x30] sm:$0xff]
          %v975 = vld [vmem:[#allocation10 + $0x38] sm:$0xff]
          %v976 = vld [vmem:[#allocation10 + $0x40] sm:$0xff]
          %v977 = vld [vmem:[#allocation10 + $0x48] sm:$0xff]
          %v978 = vld [vmem:[#allocation10 + $0x50] sm:$0xff]
          %v979 = vld [vmem:[#allocation10 + $0x58] sm:$0xff]
          %v980 = vld [vmem:[#allocation10 + $0x60] sm:$0xff]
          %v981 = vld [vmem:[#allocation10 + $0x68] sm:$0xff]
          %v982 = vld [vmem:[#allocation10 + $0x70] sm:$0xff]
          %v983 = vld [vmem:[#allocation10 + $0x78] sm:$0xff]
          %v984 = vld [vmem:[#allocation10 + $0x80] sm:$0xff]
          %v985 = vld [vmem:[#allocation10 + $0x88] sm:$0xff]
          %v986 = vld [vmem:[#allocation10 + $0x90] sm:$0xff]
          %v987 = vld [vmem:[#allocation10 + $0x98] sm:$0xff]
          %v988 = vld [vmem:[#allocation10 + $0xa0] sm:$0xff]
          %v989 = vld [vmem:[#allocation10 + $0xa8] sm:$0xff]
          %v990 = vld [vmem:[#allocation10 + $0xb0] sm:$0xff]
          %v991 = vld [vmem:[#allocation10 + $0xb8] sm:$0xff]
          %v992 = vld [vmem:[#allocation10 + $0xc0] sm:$0xff]
          %v993 = vld [vmem:[#allocation10 + $0xc8] sm:$0xff]
          %v994 = vld [vmem:[#allocation10 + $0xd0] sm:$0xff]
          %v995 = vld [vmem:[#allocation10 + $0xd8] sm:$0xff]
          %v996 = vld [vmem:[#allocation10 + $0xe0] sm:$0xff]
          %v997 = vld [vmem:[#allocation10 + $0xe8] sm:$0xff]
          %v998 = vld [vmem:[#allocation10 + $0xf0] sm:$0xff]
          %v999 = vld [vmem:[#allocation10 + $0xf8] sm:$0xff]
          %v1000 = vld [vmem:[%s6] sm:$0xf]
          %v1002 = vlaneseq
          %v1003 = vshrl.u32 %v1002, 7
          %v1004 = vsub.s32 0, %v1003
          %v1005 = vrot.slane %v1000, %v1004
          %v1006 = vlaneseq
          %v1007 = vshrl.u32 %v1006, 7
          %v1008 = vsub.s32 1, %v1007
          %v1009 = vrot.slane %v1000, %v1008
          %v1010 = vlaneseq
          %v1011 = vshrl.u32 %v1010, 7
          %v1012 = vsub.s32 2, %v1011
          %v1013 = vrot.slane %v1000, %v1012
          %v1014 = vlaneseq
          %v1015 = vshrl.u32 %v1014, 7
          %v1016 = vsub.s32 3, %v1015
          %v1017 = vrot.slane %v1000, %v1016
          %v1054 = vunpack.c.l.b16 %v968
          %v1055 = vunpack.c.h.b16 %v968
          %v1056 = vunpack.c.l.b16 %v969
          %v1057 = vunpack.c.h.b16 %v969
          %v1058 = vunpack.c.l.b16 %v970
          %v1059 = vunpack.c.h.b16 %v970
          %v1060 = vunpack.c.l.b16 %v971
          %v1061 = vunpack.c.h.b16 %v971
          %v1062 = vunpack.c.l.b16 %v972
          %v1063 = vunpack.c.h.b16 %v972
          %v1064 = vunpack.c.l.b16 %v973
          %v1065 = vunpack.c.h.b16 %v973
          %v1066 = vunpack.c.l.b16 %v974
          %v1067 = vunpack.c.h.b16 %v974
          %v1068 = vunpack.c.l.b16 %v975
          %v1069 = vunpack.c.h.b16 %v975
          %v1070 = vunpack.c.l.b16 %v976
          %v1071 = vunpack.c.h.b16 %v976
          %v1072 = vunpack.c.l.b16 %v977
          %v1073 = vunpack.c.h.b16 %v977
          %v1074 = vunpack.c.l.b16 %v978
          %v1075 = vunpack.c.h.b16 %v978
          %v1076 = vunpack.c.l.b16 %v979
          %v1077 = vunpack.c.h.b16 %v979
          %v1078 = vunpack.c.l.b16 %v980
          %v1079 = vunpack.c.h.b16 %v980
          %v1080 = vunpack.c.l.b16 %v981
          %v1081 = vunpack.c.h.b16 %v981
          %v1082 = vunpack.c.l.b16 %v982
          %v1083 = vunpack.c.h.b16 %v982
          %v1084 = vunpack.c.l.b16 %v983
          %v1085 = vunpack.c.h.b16 %v983
          %v1086 = vunpack.c.l.b16 %v984
          %v1087 = vunpack.c.h.b16 %v984
          %v1088 = vunpack.c.l.b16 %v985
          %v1089 = vunpack.c.h.b16 %v985
          %v1090 = vunpack.c.l.b16 %v986
          %v1091 = vunpack.c.h.b16 %v986
          %v1092 = vunpack.c.l.b16 %v987
          %v1093 = vunpack.c.h.b16 %v987
          %v1094 = vunpack.c.l.b16 %v988
          %v1095 = vunpack.c.h.b16 %v988
          %v1096 = vunpack.c.l.b16 %v989
          %v1097 = vunpack.c.h.b16 %v989
          %v1098 = vunpack.c.l.b16 %v990
          %v1099 = vunpack.c.h.b16 %v990
          %v1100 = vunpack.c.l.b16 %v991
          %v1101 = vunpack.c.h.b16 %v991
          %v1102 = vunpack.c.l.b16 %v992
          %v1103 = vunpack.c.h.b16 %v992
          %v1104 = vunpack.c.l.b16 %v993
          %v1105 = vunpack.c.h.b16 %v993
          %v1106 = vunpack.c.l.b16 %v994
          %v1107 = vunpack.c.h.b16 %v994
          %v1108 = vunpack.c.l.b16 %v995
          %v1109 = vunpack.c.h.b16 %v995
          %v1110 = vunpack.c.l.b16 %v996
          %v1111 = vunpack.c.h.b16 %v996
          %v1112 = vunpack.c.l.b16 %v997
          %v1113 = vunpack.c.h.b16 %v997
          %v1114 = vunpack.c.l.b16 %v998
          %v1115 = vunpack.c.h.b16 %v998
          %v1116 = vunpack.c.l.b16 %v999
          %v1117 = vunpack.c.h.b16 %v999
          %v1118 = vpack.c.b16 %v1058, %v1054
          %v1119 = vpack.c.b16 %v1059, %v1055
          %v1120 = vpack.c.b16 %v1060, %v1056
          %v1121 = vpack.c.b16 %v1061, %v1057
          %v1122 = vpack.c.b16 %v1066, %v1062
          %v1123 = vpack.c.b16 %v1067, %v1063
          %v1124 = vpack.c.b16 %v1068, %v1064
          %v1125 = vpack.c.b16 %v1069, %v1065
          %v1126 = vpack.c.b16 %v1074, %v1070
          %v1127 = vpack.c.b16 %v1075, %v1071
          %v1128 = vpack.c.b16 %v1076, %v1072
          %v1129 = vpack.c.b16 %v1077, %v1073
          %v1130 = vpack.c.b16 %v1082, %v1078
          %v1131 = vpack.c.b16 %v1083, %v1079
          %v1132 = vpack.c.b16 %v1084, %v1080
          %v1133 = vpack.c.b16 %v1085, %v1081
          %v1134 = vpack.c.b16 %v1090, %v1086
          %v1135 = vpack.c.b16 %v1091, %v1087
          %v1136 = vpack.c.b16 %v1092, %v1088
          %v1137 = vpack.c.b16 %v1093, %v1089
          %v1138 = vpack.c.b16 %v1098, %v1094
          %v1139 = vpack.c.b16 %v1099, %v1095
          %v1140 = vpack.c.b16 %v1100, %v1096
          %v1141 = vpack.c.b16 %v1101, %v1097
          %v1142 = vpack.c.b16 %v1106, %v1102
          %v1143 = vpack.c.b16 %v1107, %v1103
          %v1144 = vpack.c.b16 %v1108, %v1104
          %v1145 = vpack.c.b16 %v1109, %v1105
          %v1146 = vpack.c.b16 %v1114, %v1110
          %v1147 = vpack.c.b16 %v1115, %v1111
          %v1148 = vpack.c.b16 %v1116, %v1112
          %v1149 = vpack.c.b16 %v1117, %v1113
          %1182 = vmatprep.subr.bf16.mxu0 %v1119
          %1183 = vmatpush1.bf16.msra.mxu0 %v1118
          %1184 = vmatprep.subr.bf16.mxu0 %v1123
          %1185 = vmatpush1.bf16.msra.mxu0 %v1122
          %1186 = vmatprep.subr.bf16.mxu0 %v1127
          %1187 = vmatpush1.bf16.msra.mxu0 %v1126
          %1188 = vmatprep.subr.bf16.mxu0 %v1131
          %1189 = vmatpush1.bf16.msra.mxu0 %v1130
          %1190 = vmatprep.subr.bf16.mxu0 %v1135
          %1191 = vmatpush1.bf16.msra.mxu0 %v1134
          %1192 = vmatprep.subr.bf16.mxu0 %v1139
          %1193 = vmatpush1.bf16.msra.mxu0 %v1138
          %1194 = vmatprep.subr.bf16.mxu0 %v1143
          %1195 = vmatpush1.bf16.msra.mxu0 %v1142
          %1196 = vmatprep.subr.bf16.mxu0 %v1147
          %1197 = vmatpush1.bf16.msra.mxu0 %v1146
          %1198 = vmatprep.subr.bf16.mxu0 0
          %1199 = vmatpush1.bf16.msra.mxu0 0
          %1200 = vmatprep.subr.bf16.mxu0 0
          %1201 = vmatpush1.bf16.msra.mxu0 0
          %1202 = vmatprep.subr.bf16.mxu0 0
          %1203 = vmatpush1.bf16.msra.mxu0 0
          %1204 = vmatprep.subr.bf16.mxu0 0
          %1205 = vmatpush1.bf16.msra.mxu0 0
          %1206 = vmatprep.subr.bf16.mxu0 0
          %1207 = vmatpush1.bf16.msra.mxu0 0
          %1208 = vmatprep.subr.bf16.mxu0 0
          %1209 = vmatpush1.bf16.msra.mxu0 0
          %1210 = vmatprep.subr.bf16.mxu0 0
          %1211 = vmatpush1.bf16.msra.mxu0 0
          %1212 = vmatprep.subr.bf16.mxu0 0
          %1213 = vmatpush1.bf16.msra.mxu0 0
          %1214 = vmatprep.mubr.bf16.mxu0 0
          %1215 = vmatmul.mubr.bf16.gmra.mrb[0].mxu0 %v671
          %v1216 = vpop.f32.mrb[0].mxu0
          %v1217 = vadd.f32 %v1005, %v1216
          %v1218 = vpop.f32.mrb[0].mxu0
          %v1219 = vadd.f32 %v1009, %v1218
          %v1220 = vpop.f32.mrb[0].mxu0
          %v1221 = vpop.f32.mrb[0].mxu0
          %1222 = vdwg.mxu0
          %1223 = vmatprep.subr.bf16.mxu0 %v1121
          %1224 = vmatpush1.bf16.msra.mxu0 %v1120
          %1225 = vmatprep.subr.bf16.mxu0 %v1125
          %1226 = vmatpush1.bf16.msra.mxu0 %v1124
          %1227 = vmatprep.subr.bf16.mxu0 %v1129
          %1228 = vmatpush1.bf16.msra.mxu0 %v1128
          %1229 = vmatprep.subr.bf16.mxu0 %v1133
          %1230 = vmatpush1.bf16.msra.mxu0 %v1132
          %1231 = vmatprep.subr.bf16.mxu0 %v1137
          %1232 = vmatpush1.bf16.msra.mxu0 %v1136
          %1233 = vmatprep.subr.bf16.mxu0 %v1141
          %1234 = vmatpush1.bf16.msra.mxu0 %v1140
          %1235 = vmatprep.subr.bf16.mxu0 %v1145
          %1236 = vmatpush1.bf16.msra.mxu0 %v1144
          %1237 = vmatprep.subr.bf16.mxu0 %v1149
          %1238 = vmatpush1.bf16.msra.mxu0 %v1148
          %1239 = vmatprep.subr.bf16.mxu0 0
          %1240 = vmatpush1.bf16.msra.mxu0 0
          %1241 = vmatprep.subr.bf16.mxu0 0
          %1242 = vmatpush1.bf16.msra.mxu0 0
          %1243 = vmatprep.subr.bf16.mxu0 0
          %1244 = vmatpush1.bf16.msra.mxu0 0
          %1245 = vmatprep.subr.bf16.mxu0 0
          %1246 = vmatpush1.bf16.msra.mxu0 0
          %1247 = vmatprep.subr.bf16.mxu0 0
          %1248 = vmatpush1.bf16.msra.mxu0 0
          %1249 = vmatprep.subr.bf16.mxu0 0
          %1250 = vmatpush1.bf16.msra.mxu0 0
          %1251 = vmatprep.subr.bf16.mxu0 0
          %1252 = vmatpush1.bf16.msra.mxu0 0
          %1253 = vmatprep.subr.bf16.mxu0 0
          %1254 = vmatpush1.bf16.msra.mxu0 0
          %1255 = vmatprep.mubr.bf16.mxu0 0
          %1256 = vmatmul.mubr.bf16.gmra.mrb[0].mxu0 %v671
          %v1257 = vpop.f32.mrb[0].mxu0
          %v1258 = vadd.f32 %v1013, %v1257
          %v1259 = vpop.f32.mrb[0].mxu0
          %v1260 = vadd.f32 %v1017, %v1259
          %v1261 = vpop.f32.mrb[0].mxu0
          %v1262 = vpop.f32.mrb[0].mxu0
          %1263 = vdwg.mxu0
          %v1264 = vpack.c.bf16 %v921, %v921
          %1265 = vst [vmem:[#allocation2] sm:$0xf] %v1264
          %v1266 = vpack.c.bf16 %v1217, %v1217
          %1267 = vst [vmem:[#allocation3] sm:$0xf] %v1266
          %v1268 = vpack.c.bf16 %v923, %v923
          %s1269 = scalar_lea.vmem [#allocation2], 4
          %1270 = vst [vmem:[%s1269] sm:$0xf] %v1268
          %v1271 = vpack.c.bf16 %v1219, %v1219
          %s1272 = scalar_lea.vmem [#allocation3], 4
          %1273 = vst [vmem:[%s1272] sm:$0xf] %v1271
          %v1274 = vpack.c.bf16 %v962, %v962
          %s1275 = scalar_lea.vmem [#allocation2], 8
          %1276 = vst [vmem:[%s1275] sm:$0xf] %v1274
          %v1277 = vpack.c.bf16 %v1258, %v1258
          %s1278 = scalar_lea.vmem [#allocation3], 8
          %1279 = vst [vmem:[%s1278] sm:$0xf] %v1277
          %v1280 = vpack.c.bf16 %v964, %v964
          %s1281 = scalar_lea.vmem [#allocation2], 12
          %1282 = vst [vmem:[%s1281] sm:$0xf] %v1280
          %v1283 = vpack.c.bf16 %v1260, %v1260
          %s1284 = scalar_lea.vmem [#allocation3], 12
          %1285 = vst [vmem:[%s1284] sm:$0xf] %v1283
        $region120: #{tpu_custom_call.1} parent=87 // pred_fallthru
          _
        %s1286 = smul.u32 %s42, 8
        %s1287 = scalar_lea.vmem %s590, %s1286 [#allocation4]
        %v1288 = vld [vmem:[%s1287] sm:$0xff]
        %v1289 = vpack.c.bf16 %v1288, %v1288
        %v1290 = vld [vmem:[#allocation7] sm:$0xff]
        %v1291 = vld [vmem:[#allocation7 + $0x8] sm:$0xff]
        %v1292 = vld [vmem:[#allocation7 + $0x10] sm:$0xff]
        %v1293 = vld [vmem:[#allocation7 + $0x18] sm:$0xff]
        %v1294 = vld [vmem:[#allocation7 + $0x20] sm:$0xff]
        %v1295 = vld [vmem:[#allocation7 + $0x28] sm:$0xff]
        %v1296 = vld [vmem:[#allocation7 + $0x30] sm:$0xff]
        %v1297 = vld [vmem:[#allocation7 + $0x38] sm:$0xff]
        %v1298 = vld [vmem:[#allocation7 + $0x40] sm:$0xff]
        %v1299 = vld [vmem:[#allocation7 + $0x48] sm:$0xff]
        %v1300 = vld [vmem:[#allocation7 + $0x50] sm:$0xff]
        %v1301 = vld [vmem:[#allocation7 + $0x58] sm:$0xff]
        %v1302 = vld [vmem:[#allocation7 + $0x60] sm:$0xff]
        %v1303 = vld [vmem:[#allocation7 + $0x68] sm:$0xff]
        %v1304 = vld [vmem:[#allocation7 + $0x70] sm:$0xff]
        %v1305 = vld [vmem:[#allocation7 + $0x78] sm:$0xff]
        %v1306 = vld [vmem:[#allocation7 + $0x80] sm:$0xff]
        %v1307 = vld [vmem:[#allocation7 + $0x88] sm:$0xff]
        %v1308 = vld [vmem:[#allocation7 + $0x90] sm:$0xff]
        %v1309 = vld [vmem:[#allocation7 + $0x98] sm:$0xff]
        %v1310 = vld [vmem:[#allocation7 + $0xa0] sm:$0xff]
        %v1311 = vld [vmem:[#allocation7 + $0xa8] sm:$0xff]
        %v1312 = vld [vmem:[#allocation7 + $0xb0] sm:$0xff]
        %v1313 = vld [vmem:[#allocation7 + $0xb8] sm:$0xff]
        %v1314 = vld [vmem:[#allocation7 + $0xc0] sm:$0xff]
        %v1315 = vld [vmem:[#allocation7 + $0xc8] sm:$0xff]
        %v1316 = vld [vmem:[#allocation7 + $0xd0] sm:$0xff]
        %v1317 = vld [vmem:[#allocation7 + $0xd8] sm:$0xff]
        %v1318 = vld [vmem:[#allocation7 + $0xe0] sm:$0xff]
        %v1319 = vld [vmem:[#allocation7 + $0xe8] sm:$0xff]
        %v1320 = vld [vmem:[#allocation7 + $0xf0] sm:$0xff]
        %v1321 = vld [vmem:[#allocation7 + $0xf8] sm:$0xff]
        %v1322 = vld [vmem:[%s2] sm:$0xf]
        %v1324 = vlaneseq
        %v1325 = vshrl.u32 %v1324, 7
        %v1326 = vsub.s32 0, %v1325
        %v1327 = vrot.slane %v1322, %v1326
        %v1328 = vlaneseq
        %v1329 = vshrl.u32 %v1328, 7
        %v1330 = vsub.s32 1, %v1329
        %v1331 = vrot.slane %v1322, %v1330
        %v1332 = vlaneseq
        %v1333 = vshrl.u32 %v1332, 7
        %v1334 = vsub.s32 2, %v1333
        %v1335 = vrot.slane %v1322, %v1334
        %v1336 = vlaneseq
        %v1337 = vshrl.u32 %v1336, 7
        %v1338 = vsub.s32 3, %v1337
        %v1339 = vrot.slane %v1322, %v1338
        %v1376 = vunpack.c.l.b16 %v1290
        %v1377 = vunpack.c.h.b16 %v1290
        %v1378 = vunpack.c.l.b16 %v1291
        %v1379 = vunpack.c.h.b16 %v1291
        %v1380 = vunpack.c.l.b16 %v1292
        %v1381 = vunpack.c.h.b16 %v1292
        %v1382 = vunpack.c.l.b16 %v1293
        %v1383 = vunpack.c.h.b16 %v1293
        %v1384 = vunpack.c.l.b16 %v1294
        %v1385 = vunpack.c.h.b16 %v1294
        %v1386 = vunpack.c.l.b16 %v1295
        %v1387 = vunpack.c.h.b16 %v1295
        %v1388 = vunpack.c.l.b16 %v1296
        %v1389 = vunpack.c.h.b16 %v1296
        %v1390 = vunpack.c.l.b16 %v1297
        %v1391 = vunpack.c.h.b16 %v1297
        %v1392 = vunpack.c.l.b16 %v1298
        %v1393 = vunpack.c.h.b16 %v1298
        %v1394 = vunpack.c.l.b16 %v1299
        %v1395 = vunpack.c.h.b16 %v1299
        %v1396 = vunpack.c.l.b16 %v1300
        %v1397 = vunpack.c.h.b16 %v1300
        %v1398 = vunpack.c.l.b16 %v1301
        %v1399 = vunpack.c.h.b16 %v1301
        %v1400 = vunpack.c.l.b16 %v1302
        %v1401 = vunpack.c.h.b16 %v1302
        %v1402 = vunpack.c.l.b16 %v1303
        %v1403 = vunpack.c.h.b16 %v1303
        %v1404 = vunpack.c.l.b16 %v1304
        %v1405 = vunpack.c.h.b16 %v1304
        %v1406 = vunpack.c.l.b16 %v1305
        %v1407 = vunpack.c.h.b16 %v1305
        %v1408 = vunpack.c.l.b16 %v1306
        %v1409 = vunpack.c.h.b16 %v1306
        %v1410 = vunpack.c.l.b16 %v1307
        %v1411 = vunpack.c.h.b16 %v1307
        %v1412 = vunpack.c.l.b16 %v1308
        %v1413 = vunpack.c.h.b16 %v1308
        %v1414 = vunpack.c.l.b16 %v1309
        %v1415 = vunpack.c.h.b16 %v1309
        %v1416 = vunpack.c.l.b16 %v1310
        %v1417 = vunpack.c.h.b16 %v1310
        %v1418 = vunpack.c.l.b16 %v1311
        %v1419 = vunpack.c.h.b16 %v1311
        %v1420 = vunpack.c.l.b16 %v1312
        %v1421 = vunpack.c.h.b16 %v1312
        %v1422 = vunpack.c.l.b16 %v1313
        %v1423 = vunpack.c.h.b16 %v1313
        %v1424 = vunpack.c.l.b16 %v1314
        %v1425 = vunpack.c.h.b16 %v1314
        %v1426 = vunpack.c.l.b16 %v1315
        %v1427 = vunpack.c.h.b16 %v1315
        %v1428 = vunpack.c.l.b16 %v1316
        %v1429 = vunpack.c.h.b16 %v1316
        %v1430 = vunpack.c.l.b16 %v1317
        %v1431 = vunpack.c.h.b16 %v1317
        %v1432 = vunpack.c.l.b16 %v1318
        %v1433 = vunpack.c.h.b16 %v1318
        %v1434 = vunpack.c.l.b16 %v1319
        %v1435 = vunpack.c.h.b16 %v1319
        %v1436 = vunpack.c.l.b16 %v1320
        %v1437 = vunpack.c.h.b16 %v1320
        %v1438 = vunpack.c.l.b16 %v1321
        %v1439 = vunpack.c.h.b16 %v1321
        %v1440 = vpack.c.b16 %v1380, %v1376
        %v1441 = vpack.c.b16 %v1381, %v1377
        %v1442 = vpack.c.b16 %v1382, %v1378
        %v1443 = vpack.c.b16 %v1383, %v1379
        %v1444 = vpack.c.b16 %v1388, %v1384
        %v1445 = vpack.c.b16 %v1389, %v1385
        %v1446 = vpack.c.b16 %v1390, %v1386
        %v1447 = vpack.c.b16 %v1391, %v1387
        %v1448 = vpack.c.b16 %v1396, %v1392
        %v1449 = vpack.c.b16 %v1397, %v1393
        %v1450 = vpack.c.b16 %v1398, %v1394
        %v1451 = vpack.c.b16 %v1399, %v1395
        %v1452 = vpack.c.b16 %v1404, %v1400
        %v1453 = vpack.c.b16 %v1405, %v1401
        %v1454 = vpack.c.b16 %v1406, %v1402
        %v1455 = vpack.c.b16 %v1407, %v1403
        %v1456 = vpack.c.b16 %v1412, %v1408
        %v1457 = vpack.c.b16 %v1413, %v1409
        %v1458 = vpack.c.b16 %v1414, %v1410
        %v1459 = vpack.c.b16 %v1415, %v1411
        %v1460 = vpack.c.b16 %v1420, %v1416
        %v1461 = vpack.c.b16 %v1421, %v1417
        %v1462 = vpack.c.b16 %v1422, %v1418
        %v1463 = vpack.c.b16 %v1423, %v1419
        %v1464 = vpack.c.b16 %v1428, %v1424
        %v1465 = vpack.c.b16 %v1429, %v1425
        %v1466 = vpack.c.b16 %v1430, %v1426
        %v1467 = vpack.c.b16 %v1431, %v1427
        %v1468 = vpack.c.b16 %v1436, %v1432
        %v1469 = vpack.c.b16 %v1437, %v1433
        %v1470 = vpack.c.b16 %v1438, %v1434
        %v1471 = vpack.c.b16 %v1439, %v1435
        %1504 = vmatprep.subr.bf16.mxu0 %v1441
        %1505 = vmatpush1.bf16.msra.mxu0 %v1440
        %1506 = vmatprep.subr.bf16.mxu0 %v1445
        %1507 = vmatpush1.bf16.msra.mxu0 %v1444
        %1508 = vmatprep.subr.bf16.mxu0 %v1449
        %1509 = vmatpush1.bf16.msra.mxu0 %v1448
        %1510 = vmatprep.subr.bf16.mxu0 %v1453
        %1511 = vmatpush1.bf16.msra.mxu0 %v1452
        %1512 = vmatprep.subr.bf16.mxu0 %v1457
        %1513 = vmatpush1.bf16.msra.mxu0 %v1456
        %1514 = vmatprep.subr.bf16.mxu0 %v1461
        %1515 = vmatpush1.bf16.msra.mxu0 %v1460
        %1516 = vmatprep.subr.bf16.mxu0 %v1465
        %1517 = vmatpush1.bf16.msra.mxu0 %v1464
        %1518 = vmatprep.subr.bf16.mxu0 %v1469
        %1519 = vmatpush1.bf16.msra.mxu0 %v1468
        %1520 = vmatprep.subr.bf16.mxu0 0
        %1521 = vmatpush1.bf16.msra.mxu0 0
        %1522 = vmatprep.subr.bf16.mxu0 0
        %1523 = vmatpush1.bf16.msra.mxu0 0
        %1524 = vmatprep.subr.bf16.mxu0 0
        %1525 = vmatpush1.bf16.msra.mxu0 0
        %1526 = vmatprep.subr.bf16.mxu0 0
        %1527 = vmatpush1.bf16.msra.mxu0 0
        %1528 = vmatprep.subr.bf16.mxu0 0
        %1529 = vmatpush1.bf16.msra.mxu0 0
        %1530 = vmatprep.subr.bf16.mxu0 0
        %1531 = vmatpush1.bf16.msra.mxu0 0
        %1532 = vmatprep.subr.bf16.mxu0 0
        %1533 = vmatpush1.bf16.msra.mxu0 0
        %1534 = vmatprep.subr.bf16.mxu0 0
        %1535 = vmatpush1.bf16.msra.mxu0 0
        %1536 = vmatprep.mubr.bf16.mxu0 0
        %1537 = vmatmul.mubr.bf16.gmra.mrb[0].mxu0 %v1289
        %v1538 = vpop.f32.mrb[0].mxu0
        %v1539 = vadd.f32 %v1327, %v1538
        %v1540 = vpop.f32.mrb[0].mxu0
        %v1541 = vadd.f32 %v1331, %v1540
        %v1542 = vpop.f32.mrb[0].mxu0
        %v1543 = vpop.f32.mrb[0].mxu0
        %1544 = vdwg.mxu0
        %1545 = vmatprep.subr.bf16.mxu0 %v1443
        %1546 = vmatpush1.bf16.msra.mxu0 %v1442
        %1547 = vmatprep.subr.bf16.mxu0 %v1447
        %1548 = vmatpush1.bf16.msra.mxu0 %v1446
        %1549 = vmatprep.subr.bf16.mxu0 %v1451
        %1550 = vmatpush1.bf16.msra.mxu0 %v1450
        %1551 = vmatprep.subr.bf16.mxu0 %v1455
        %1552 = vmatpush1.bf16.msra.mxu0 %v1454
        %1553 = vmatprep.subr.bf16.mxu0 %v1459
        %1554 = vmatpush1.bf16.msra.mxu0 %v1458
        %1555 = vmatprep.subr.bf16.mxu0 %v1463
        %1556 = vmatpush1.bf16.msra.mxu0 %v1462
        %1557 = vmatprep.subr.bf16.mxu0 %v1467
        %1558 = vmatpush1.bf16.msra.mxu0 %v1466
        %1559 = vmatprep.subr.bf16.mxu0 %v1471
        %1560 = vmatpush1.bf16.msra.mxu0 %v1470
        %1561 = vmatprep.subr.bf16.mxu0 0
        %1562 = vmatpush1.bf16.msra.mxu0 0
        %1563 = vmatprep.subr.bf16.mxu0 0
        %1564 = vmatpush1.bf16.msra.mxu0 0
        %1565 = vmatprep.subr.bf16.mxu0 0
        %1566 = vmatpush1.bf16.msra.mxu0 0
        %1567 = vmatprep.subr.bf16.mxu0 0
        %1568 = vmatpush1.bf16.msra.mxu0 0
        %1569 = vmatprep.subr.bf16.mxu0 0
        %1570 = vmatpush1.bf16.msra.mxu0 0
        %1571 = vmatprep.subr.bf16.mxu0 0
        %1572 = vmatpush1.bf16.msra.mxu0 0
        %1573 = vmatprep.subr.bf16.mxu0 0
        %1574 = vmatpush1.bf16.msra.mxu0 0
        %1575 = vmatprep.subr.bf16.mxu0 0
        %1576 = vmatpush1.bf16.msra.mxu0 0
        %1577 = vmatprep.mubr.bf16.mxu0 0
        %1578 = vmatmul.mubr.bf16.gmra.mrb[0].mxu0 %v1289
        %v1579 = vpop.f32.mrb[0].mxu0
        %v1580 = vadd.f32 %v1335, %v1579
        %v1581 = vpop.f32.mrb[0].mxu0
        %v1582 = vadd.f32 %v1339, %v1581
        %v1583 = vpop.f32.mrb[0].mxu0
        %v1584 = vpop.f32.mrb[0].mxu0
        %1585 = vdwg.mxu0
        %v1586 = vpack.c.bf16 %v1539, %v1539
        %v1587 = vpack.c.bf16 %v1541, %v1541
        %v1588 = vpack.c.bf16 %v1580, %v1580
        %v1589 = vpack.c.bf16 %v1582, %v1582
        %v1590 = vld [vmem:[#allocation2] sm:$0xf]
        %v1591 = vld [vmem:[#allocation2 + $0x4] sm:$0xf]
        %v1592 = vld [vmem:[#allocation2 + $0x8] sm:$0xf]
        %v1593 = vld [vmem:[#allocation2 + $0xc] sm:$0xf]
        %1594 = vmatprep.subr.bf16.mxu0 0
        %1595 = vmatpush1.bf16.xpose.msra.mxu0 %v1590
        %1596 = vmatprep.subr.bf16.mxu0 0
        %1597 = vmatpush1.bf16.xpose.msra.mxu0 0
        %1598 = vmatprep.subr.bf16.mxu0 0
        %1599 = vmatpush1.bf16.xpose.msra.mxu0 0
        %1600 = vmatprep.subr.bf16.mxu0 0
        %1601 = vmatpush1.bf16.xpose.msra.mxu0 0
        %1602 = vmatprep.subr.bf16.mxu0 0
        %1603 = vmatpush1.bf16.xpose.msra.mxu0 0
        %1604 = vmatprep.subr.bf16.mxu0 0
        %1605 = vmatpush1.bf16.xpose.msra.mxu0 0
        %1606 = vmatprep.subr.bf16.mxu0 0
        %1607 = vmatpush1.bf16.xpose.msra.mxu0 0
        %1608 = vmatprep.subr.bf16.mxu0 0
        %1609 = vmatpush1.bf16.xpose.msra.mxu0 0
        %1610 = vmatprep.subr.bf16.mxu0 0
        %1611 = vmatpush1.bf16.xpose.msra.mxu0 0
        %1612 = vmatprep.subr.bf16.mxu0 0
        %1613 = vmatpush1.bf16.xpose.msra.mxu0 0
        %1614 = vmatprep.subr.bf16.mxu0 0
        %1615 = vmatpush1.bf16.xpose.msra.mxu0 0
        %1616 = vmatprep.subr.bf16.mxu0 0
        %1617 = vmatpush1.bf16.xpose.msra.mxu0 0
        %1618 = vmatprep.subr.bf16.mxu0 0
        %1619 = vmatpush1.bf16.xpose.msra.mxu0 0
        %1620 = vmatprep.subr.bf16.mxu0 0
        %1621 = vmatpush1.bf16.xpose.msra.mxu0 0
        %1622 = vmatprep.subr.bf16.mxu0 0
        %1623 = vmatpush1.bf16.xpose.msra.mxu0 0
        %1624 = vmatprep.subr.bf16.mxu0 0
        %1625 = vmatpush1.bf16.xpose.msra.mxu0 0
        %1626 = vmatprep.mubr.bf16.mxu0 0
        %1627 = vmatmul.mubr.bf16.gmra.mrb[0].mxu0 %v1586
        %v1628 = vpop.f32.mrb[0].mxu0
        %v1629 = vadd.f32 0.0, %v1628
        %v1630 = vpop.f32.mrb[0].mxu0
        %v1631 = vpop.f32.mrb[0].mxu0
        %v1632 = vpop.f32.mrb[0].mxu0
        %1633 = vdwg.mxu0
        %1634 = vmatprep.subr.bf16.mxu0 0
        %1635 = vmatpush1.bf16.xpose.msra.mxu0 %v1591
        %1636 = vmatprep.subr.bf16.mxu0 0
        %1637 = vmatpush1.bf16.xpose.msra.mxu0 0
        %1638 = vmatprep.subr.bf16.mxu0 0
        %1639 = vmatpush1.bf16.xpose.msra.mxu0 0
        %1640 = vmatprep.subr.bf16.mxu0 0
        %1641 = vmatpush1.bf16.xpose.msra.mxu0 0
        %1642 = vmatprep.subr.bf16.mxu0 0
        %1643 = vmatpush1.bf16.xpose.msra.mxu0 0
        %1644 = vmatprep.subr.bf16.mxu0 0
        %1645 = vmatpush1.bf16.xpose.msra.mxu0 0
        %1646 = vmatprep.subr.bf16.mxu0 0
        %1647 = vmatpush1.bf16.xpose.msra.mxu0 0
        %1648 = vmatprep.subr.bf16.mxu0 0
        %1649 = vmatpush1.bf16.xpose.msra.mxu0 0
        %1650 = vmatprep.subr.bf16.mxu0 0
        %1651 = vmatpush1.bf16.xpose.msra.mxu0 0
        %1652 = vmatprep.subr.bf16.mxu0 0
        %1653 = vmatpush1.bf16.xpose.msra.mxu0 0
        %1654 = vmatprep.subr.bf16.mxu0 0
        %1655 = vmatpush1.bf16.xpose.msra.mxu0 0
        %1656 = vmatprep.subr.bf16.mxu0 0
        %1657 = vmatpush1.bf16.xpose.msra.mxu0 0
        %1658 = vmatprep.subr.bf16.mxu0 0
        %1659 = vmatpush1.bf16.xpose.msra.mxu0 0
        %1660 = vmatprep.subr.bf16.mxu0 0
        %1661 = vmatpush1.bf16.xpose.msra.mxu0 0
        %1662 = vmatprep.subr.bf16.mxu0 0
        %1663 = vmatpush1.bf16.xpose.msra.mxu0 0
        %1664 = vmatprep.subr.bf16.mxu0 0
        %1665 = vmatpush1.bf16.xpose.msra.mxu0 0
        %1666 = vmatprep.mubr.bf16.mxu0 0
        %1667 = vmatmul.mubr.bf16.gmra.mrb[0].mxu0 %v1587
        %v1668 = vpop.f32.mrb[0].mxu0
        %v1669 = vadd.f32 0.0, %v1668
        %v1670 = vpop.f32.mrb[0].mxu0
        %v1671 = vpop.f32.mrb[0].mxu0
        %v1672 = vpop.f32.mrb[0].mxu0
        %1673 = vdwg.mxu0
        %1674 = vmatprep.subr.bf16.mxu0 0
        %1675 = vmatpush1.bf16.xpose.msra.mxu0 %v1592
        %1676 = vmatprep.subr.bf16.mxu0 0
        %1677 = vmatpush1.bf16.xpose.msra.mxu0 0
        %1678 = vmatprep.subr.bf16.mxu0 0
        %1679 = vmatpush1.bf16.xpose.msra.mxu0 0
        %1680 = vmatprep.subr.bf16.mxu0 0
        %1681 = vmatpush1.bf16.xpose.msra.mxu0 0
        %1682 = vmatprep.subr.bf16.mxu0 0
        %1683 = vmatpush1.bf16.xpose.msra.mxu0 0
        %1684 = vmatprep.subr.bf16.mxu0 0
        %1685 = vmatpush1.bf16.xpose.msra.mxu0 0
        %1686 = vmatprep.subr.bf16.mxu0 0
        %1687 = vmatpush1.bf16.xpose.msra.mxu0 0
        %1688 = vmatprep.subr.bf16.mxu0 0
        %1689 = vmatpush1.bf16.xpose.msra.mxu0 0
        %1690 = vmatprep.subr.bf16.mxu0 0
        %1691 = vmatpush1.bf16.xpose.msra.mxu0 0
        %1692 = vmatprep.subr.bf16.mxu0 0
        %1693 = vmatpush1.bf16.xpose.msra.mxu0 0
        %1694 = vmatprep.subr.bf16.mxu0 0
        %1695 = vmatpush1.bf16.xpose.msra.mxu0 0
        %1696 = vmatprep.subr.bf16.mxu0 0
        %1697 = vmatpush1.bf16.xpose.msra.mxu0 0
        %1698 = vmatprep.subr.bf16.mxu0 0
        %1699 = vmatpush1.bf16.xpose.msra.mxu0 0
        %1700 = vmatprep.subr.bf16.mxu0 0
        %1701 = vmatpush1.bf16.xpose.msra.mxu0 0
        %1702 = vmatprep.subr.bf16.mxu0 0
        %1703 = vmatpush1.bf16.xpose.msra.mxu0 0
        %1704 = vmatprep.subr.bf16.mxu0 0
        %1705 = vmatpush1.bf16.xpose.msra.mxu0 0
        %1706 = vmatprep.mubr.bf16.mxu0 0
        %1707 = vmatmul.mubr.bf16.gmra.mrb[0].mxu0 %v1588
        %v1708 = vpop.f32.mrb[0].mxu0
        %v1709 = vadd.f32 0.0, %v1708
        %v1710 = vpop.f32.mrb[0].mxu0
        %v1711 = vpop.f32.mrb[0].mxu0
        %v1712 = vpop.f32.mrb[0].mxu0
        %1713 = vdwg.mxu0
        %1714 = vmatprep.subr.bf16.mxu0 0
        %1715 = vmatpush1.bf16.xpose.msra.mxu0 %v1593
        %1716 = vmatprep.subr.bf16.mxu0 0
        %1717 = vmatpush1.bf16.xpose.msra.mxu0 0
        %1718 = vmatprep.subr.bf16.mxu0 0
        %1719 = vmatpush1.bf16.xpose.msra.mxu0 0
        %1720 = vmatprep.subr.bf16.mxu0 0
        %1721 = vmatpush1.bf16.xpose.msra.mxu0 0
        %1722 = vmatprep.subr.bf16.mxu0 0
        %1723 = vmatpush1.bf16.xpose.msra.mxu0 0
        %1724 = vmatprep.subr.bf16.mxu0 0
        %1725 = vmatpush1.bf16.xpose.msra.mxu0 0
        %1726 = vmatprep.subr.bf16.mxu0 0
        %1727 = vmatpush1.bf16.xpose.msra.mxu0 0
        %1728 = vmatprep.subr.bf16.mxu0 0
        %1729 = vmatpush1.bf16.xpose.msra.mxu0 0
        %1730 = vmatprep.subr.bf16.mxu0 0
        %1731 = vmatpush1.bf16.xpose.msra.mxu0 0
        %1732 = vmatprep.subr.bf16.mxu0 0
        %1733 = vmatpush1.bf16.xpose.msra.mxu0 0
        %1734 = vmatprep.subr.bf16.mxu0 0
        %1735 = vmatpush1.bf16.xpose.msra.mxu0 0
        %1736 = vmatprep.subr.bf16.mxu0 0
        %1737 = vmatpush1.bf16.xpose.msra.mxu0 0
        %1738 = vmatprep.subr.bf16.mxu0 0
        %1739 = vmatpush1.bf16.xpose.msra.mxu0 0
        %1740 = vmatprep.subr.bf16.mxu0 0
        %1741 = vmatpush1.bf16.xpose.msra.mxu0 0
        %1742 = vmatprep.subr.bf16.mxu0 0
        %1743 = vmatpush1.bf16.xpose.msra.mxu0 0
        %1744 = vmatprep.subr.bf16.mxu0 0
        %1745 = vmatpush1.bf16.xpose.msra.mxu0 0
        %1746 = vmatprep.mubr.bf16.mxu0 0
        %1747 = vmatmul.mubr.bf16.gmra.mrb[0].mxu0 %v1589
        %v1748 = vpop.f32.mrb[0].mxu0
        %v1749 = vadd.f32 0.0, %v1748
        %v1750 = vpop.f32.mrb[0].mxu0
        %v1751 = vpop.f32.mrb[0].mxu0
        %v1752 = vpop.f32.mrb[0].mxu0
        %1753 = vdwg.mxu0
        %vm1754 = vcmask 64512
        %v1755 = vsel %vm1754, %v1629, -inf
        %1756 = vmax.xlane.f32.xlu0 %v1755
        %v1757 = vpop.xlane.xlu0 %1756
        %v1758 = vsel %vm1754, %v1669, -inf
        %1759 = vmax.xlane.f32.xlu0 %v1758
        %v1760 = vpop.xlane.xlu0 %1759
        %v1761 = vsel %vm1754, %v1709, -inf
        %1762 = vmax.xlane.f32.xlu0 %v1761
        %v1763 = vpop.xlane.xlu0 %1762
        %v1764 = vsel %vm1754, %v1749, -inf
        %1765 = vmax.xlane.f32.xlu0 %v1764
        %v1766 = vpop.xlane.xlu0 %1765
        %v1767 = vsub.f32 %v1629, %v1757
        %v1768 = vsub.f32 %v1669, %v1760
        %v1769 = vsub.f32 %v1709, %v1763
        %v1770 = vsub.f32 %v1749, %v1766
        %v1771 = vmul.f32 %v1767, 1.442695
        %v1772 = vpow.pop %v1771
        %v1773 = vmul.f32 %v1768, 1.442695
        %v1774 = vpow.pop %v1773
        %v1775 = vmul.f32 %v1769, 1.442695
        %v1776 = vpow.pop %v1775
        %v1777 = vmul.f32 %v1770, 1.442695
        %v1778 = vpow.pop %v1777
        %v1779 = vsel %vm1754, %v1772, 0.0
        %1780 = vadd.xlane.f32.xlu0 %v1779
        %v1781 = vpop.xlane.xlu0 %1780
        %v1782 = vsel %vm1754, %v1774, 0.0
        %1783 = vadd.xlane.f32.xlu0 %v1782
        %v1784 = vpop.xlane.xlu0 %1783
        %v1785 = vsel %vm1754, %v1776, 0.0
        %1786 = vadd.xlane.f32.xlu0 %v1785
        %v1787 = vpop.xlane.xlu0 %1786
        %v1788 = vsel %vm1754, %v1778, 0.0
        %1789 = vadd.xlane.f32.xlu0 %v1788
        %v1790 = vpop.xlane.xlu0 %1789
        %v1791 = vrcp.pop %v1781
        %v1792 = vrcp.pop %v1784
        %v1793 = vrcp.pop %v1787
        %v1794 = vrcp.pop %v1790
        %v1795 = vmul.f32 %v1772, %v1791
        %v1796 = vmul.f32 %v1774, %v1792
        %v1797 = vmul.f32 %v1776, %v1793
        %v1798 = vmul.f32 %v1778, %v1794
        %v1799 = vpack.c.bf16 %v1795, %v1795
        %v1800 = vpack.c.bf16 %v1796, %v1796
        %v1801 = vpack.c.bf16 %v1797, %v1797
        %v1802 = vpack.c.bf16 %v1798, %v1798
        %v1803 = vld [vmem:[#allocation3] sm:$0xf]
        %v1804 = vld [vmem:[#allocation3 + $0x4] sm:$0xf]
        %v1805 = vld [vmem:[#allocation3 + $0x8] sm:$0xf]
        %v1806 = vld [vmem:[#allocation3 + $0xc] sm:$0xf]
        %v1808 = vsel %vm1754, %v1799, 0
        %vm1810 = vcmask 1043456
        %v1812 = vsel %vm1810, %v1803, 0
        %1814 = vmatprep.subr.bf16.mxu0 0
        %1815 = vmatpush1.bf16.msra.mxu0 %v1812
        %1816 = vmatprep.subr.bf16.mxu0 0
        %1817 = vmatpush1.bf16.msra.mxu0 0
        %1818 = vmatprep.subr.bf16.mxu0 0
        %1819 = vmatpush1.bf16.msra.mxu0 0
        %1820 = vmatprep.subr.bf16.mxu0 0
        %1821 = vmatpush1.bf16.msra.mxu0 0
        %1822 = vmatprep.subr.bf16.mxu0 0
        %1823 = vmatpush1.bf16.msra.mxu0 0
        %1824 = vmatprep.subr.bf16.mxu0 0
        %1825 = vmatpush1.bf16.msra.mxu0 0
        %1826 = vmatprep.subr.bf16.mxu0 0
        %1827 = vmatpush1.bf16.msra.mxu0 0
        %1828 = vmatprep.subr.bf16.mxu0 0
        %1829 = vmatpush1.bf16.msra.mxu0 0
        %1830 = vmatprep.subr.bf16.mxu0 0
        %1831 = vmatpush1.bf16.msra.mxu0 0
        %1832 = vmatprep.subr.bf16.mxu0 0
        %1833 = vmatpush1.bf16.msra.mxu0 0
        %1834 = vmatprep.subr.bf16.mxu0 0
        %1835 = vmatpush1.bf16.msra.mxu0 0
        %1836 = vmatprep.subr.bf16.mxu0 0
        %1837 = vmatpush1.bf16.msra.mxu0 0
        %1838 = vmatprep.subr.bf16.mxu0 0
        %1839 = vmatpush1.bf16.msra.mxu0 0
        %1840 = vmatprep.subr.bf16.mxu0 0
        %1841 = vmatpush1.bf16.msra.mxu0 0
        %1842 = vmatprep.subr.bf16.mxu0 0
        %1843 = vmatpush1.bf16.msra.mxu0 0
        %1844 = vmatprep.subr.bf16.mxu0 0
        %1845 = vmatpush1.bf16.msra.mxu0 0
        %1846 = vmatprep.mubr.bf16.mxu0 0
        %1847 = vmatmul.mubr.bf16.gmra.mrb[0].mxu0 %v1808
        %v1848 = vpop.f32.mrb[0].mxu0
        %v1849 = vadd.f32 0.0, %v1848
        %v1850 = vpop.f32.mrb[0].mxu0
        %v1851 = vpop.f32.mrb[0].mxu0
        %v1852 = vpop.f32.mrb[0].mxu0
        %1853 = vdwg.mxu0
        %v1855 = vsel %vm1754, %v1800, 0
        %v1858 = vsel %vm1810, %v1804, 0
        %1860 = vmatprep.subr.bf16.mxu0 0
        %1861 = vmatpush1.bf16.msra.mxu0 %v1858
        %1862 = vmatprep.subr.bf16.mxu0 0
        %1863 = vmatpush1.bf16.msra.mxu0 0
        %1864 = vmatprep.subr.bf16.mxu0 0
        %1865 = vmatpush1.bf16.msra.mxu0 0
        %1866 = vmatprep.subr.bf16.mxu0 0
        %1867 = vmatpush1.bf16.msra.mxu0 0
        %1868 = vmatprep.subr.bf16.mxu0 0
        %1869 = vmatpush1.bf16.msra.mxu0 0
        %1870 = vmatprep.subr.bf16.mxu0 0
        %1871 = vmatpush1.bf16.msra.mxu0 0
        %1872 = vmatprep.subr.bf16.mxu0 0
        %1873 = vmatpush1.bf16.msra.mxu0 0
        %1874 = vmatprep.subr.bf16.mxu0 0
        %1875 = vmatpush1.bf16.msra.mxu0 0
        %1876 = vmatprep.subr.bf16.mxu0 0
        %1877 = vmatpush1.bf16.msra.mxu0 0
        %1878 = vmatprep.subr.bf16.mxu0 0
        %1879 = vmatpush1.bf16.msra.mxu0 0
        %1880 = vmatprep.subr.bf16.mxu0 0
        %1881 = vmatpush1.bf16.msra.mxu0 0
        %1882 = vmatprep.subr.bf16.mxu0 0
        %1883 = vmatpush1.bf16.msra.mxu0 0
        %1884 = vmatprep.subr.bf16.mxu0 0
        %1885 = vmatpush1.bf16.msra.mxu0 0
        %1886 = vmatprep.subr.bf16.mxu0 0
        %1887 = vmatpush1.bf16.msra.mxu0 0
        %1888 = vmatprep.subr.bf16.mxu0 0
        %1889 = vmatpush1.bf16.msra.mxu0 0
        %1890 = vmatprep.subr.bf16.mxu0 0
        %1891 = vmatpush1.bf16.msra.mxu0 0
        %1892 = vmatprep.mubr.bf16.mxu0 0
        %1893 = vmatmul.mubr.bf16.gmra.mrb[0].mxu0 %v1855
        %v1894 = vpop.f32.mrb[0].mxu0
        %v1895 = vadd.f32 0.0, %v1894
        %v1896 = vpop.f32.mrb[0].mxu0
        %v1897 = vpop.f32.mrb[0].mxu0
        %v1898 = vpop.f32.mrb[0].mxu0
        %1899 = vdwg.mxu0
        %v1901 = vsel %vm1754, %v1801, 0
        %v1904 = vsel %vm1810, %v1805, 0
        %1906 = vmatprep.subr.bf16.mxu0 0
        %1907 = vmatpush1.bf16.msra.mxu0 %v1904
        %1908 = vmatprep.subr.bf16.mxu0 0
        %1909 = vmatpush1.bf16.msra.mxu0 0
        %1910 = vmatprep.subr.bf16.mxu0 0
        %1911 = vmatpush1.bf16.msra.mxu0 0
        %1912 = vmatprep.subr.bf16.mxu0 0
        %1913 = vmatpush1.bf16.msra.mxu0 0
        %1914 = vmatprep.subr.bf16.mxu0 0
        %1915 = vmatpush1.bf16.msra.mxu0 0
        %1916 = vmatprep.subr.bf16.mxu0 0
        %1917 = vmatpush1.bf16.msra.mxu0 0
        %1918 = vmatprep.subr.bf16.mxu0 0
        %1919 = vmatpush1.bf16.msra.mxu0 0
        %1920 = vmatprep.subr.bf16.mxu0 0
        %1921 = vmatpush1.bf16.msra.mxu0 0
        %1922 = vmatprep.subr.bf16.mxu0 0
        %1923 = vmatpush1.bf16.msra.mxu0 0
        %1924 = vmatprep.subr.bf16.mxu0 0
        %1925 = vmatpush1.bf16.msra.mxu0 0
        %1926 = vmatprep.subr.bf16.mxu0 0
        %1927 = vmatpush1.bf16.msra.mxu0 0
        %1928 = vmatprep.subr.bf16.mxu0 0
        %1929 = vmatpush1.bf16.msra.mxu0 0
        %1930 = vmatprep.subr.bf16.mxu0 0
        %1931 = vmatpush1.bf16.msra.mxu0 0
        %1932 = vmatprep.subr.bf16.mxu0 0
        %1933 = vmatpush1.bf16.msra.mxu0 0
        %1934 = vmatprep.subr.bf16.mxu0 0
        %1935 = vmatpush1.bf16.msra.mxu0 0
        %1936 = vmatprep.subr.bf16.mxu0 0
        %1937 = vmatpush1.bf16.msra.mxu0 0
        %1938 = vmatprep.mubr.bf16.mxu0 0
        %1939 = vmatmul.mubr.bf16.gmra.mrb[0].mxu0 %v1901
        %v1940 = vpop.f32.mrb[0].mxu0
        %v1941 = vadd.f32 0.0, %v1940
        %v1942 = vpop.f32.mrb[0].mxu0
        %v1943 = vpop.f32.mrb[0].mxu0
        %v1944 = vpop.f32.mrb[0].mxu0
        %1945 = vdwg.mxu0
        %v1947 = vsel %vm1754, %v1802, 0
        %v1950 = vsel %vm1810, %v1806, 0
        %1952 = vmatprep.subr.bf16.mxu0 0
        %1953 = vmatpush1.bf16.msra.mxu0 %v1950
        %1954 = vmatprep.subr.bf16.mxu0 0
        %1955 = vmatpush1.bf16.msra.mxu0 0
        %1956 = vmatprep.subr.bf16.mxu0 0
        %1957 = vmatpush1.bf16.msra.mxu0 0
        %1958 = vmatprep.subr.bf16.mxu0 0
        %1959 = vmatpush1.bf16.msra.mxu0 0
        %1960 = vmatprep.subr.bf16.mxu0 0
        %1961 = vmatpush1.bf16.msra.mxu0 0
        %1962 = vmatprep.subr.bf16.mxu0 0
        %1963 = vmatpush1.bf16.msra.mxu0 0
        %1964 = vmatprep.subr.bf16.mxu0 0
        %1965 = vmatpush1.bf16.msra.mxu0 0
        %1966 = vmatprep.subr.bf16.mxu0 0
        %1967 = vmatpush1.bf16.msra.mxu0 0
        %1968 = vmatprep.subr.bf16.mxu0 0
        %1969 = vmatpush1.bf16.msra.mxu0 0
        %1970 = vmatprep.subr.bf16.mxu0 0
        %1971 = vmatpush1.bf16.msra.mxu0 0
        %1972 = vmatprep.subr.bf16.mxu0 0
        %1973 = vmatpush1.bf16.msra.mxu0 0
        %1974 = vmatprep.subr.bf16.mxu0 0
        %1975 = vmatpush1.bf16.msra.mxu0 0
        %1976 = vmatprep.subr.bf16.mxu0 0
        %1977 = vmatpush1.bf16.msra.mxu0 0
        %1978 = vmatprep.subr.bf16.mxu0 0
        %1979 = vmatpush1.bf16.msra.mxu0 0
        %1980 = vmatprep.subr.bf16.mxu0 0
        %1981 = vmatpush1.bf16.msra.mxu0 0
        %1982 = vmatprep.subr.bf16.mxu0 0
        %1983 = vmatpush1.bf16.msra.mxu0 0
        %1984 = vmatprep.mubr.bf16.mxu0 0
        %1985 = vmatmul.mubr.bf16.gmra.mrb[0].mxu0 %v1947
        %v1986 = vpop.f32.mrb[0].mxu0
        %v1987 = vadd.f32 0.0, %v1986
        %v1988 = vpop.f32.mrb[0].mxu0
        %v1989 = vpop.f32.mrb[0].mxu0
        %v1990 = vpop.f32.mrb[0].mxu0
        %1991 = vdwg.mxu0
        %v1992 = vpack.c.bf16 %v1849, %v1849
        %v1993 = vpack.c.bf16 %v1895, %v1895
        %v1994 = vpack.c.bf16 %v1941, %v1941
        %v1995 = vpack.c.bf16 %v1987, %v1987
        %v1996 = vld [vmem:[#allocation12] sm:$0xf]
        %v1997 = vld [vmem:[#allocation12 + $0x4] sm:$0xf]
        %v1998 = vld [vmem:[#allocation12 + $0x8] sm:$0xf]
        %v1999 = vld [vmem:[#allocation12 + $0xc] sm:$0xf]
        %v2000 = vld [vmem:[#allocation12 + $0x10] sm:$0xf]
        %v2001 = vld [vmem:[#allocation12 + $0x14] sm:$0xf]
        %v2002 = vld [vmem:[#allocation12 + $0x18] sm:$0xf]
        %v2003 = vld [vmem:[#allocation12 + $0x1c] sm:$0xf]
        %v2004 = vld [vmem:[#allocation12 + $0x20] sm:$0xf]
        %v2005 = vld [vmem:[#allocation12 + $0x24] sm:$0xf]
        %v2006 = vld [vmem:[#allocation12 + $0x28] sm:$0xf]
        %v2007 = vld [vmem:[#allocation12 + $0x2c] sm:$0xf]
        %v2008 = vld [vmem:[#allocation12 + $0x30] sm:$0xf]
        %v2009 = vld [vmem:[#allocation12 + $0x34] sm:$0xf]
        %v2010 = vld [vmem:[#allocation12 + $0x38] sm:$0xf]
        %v2011 = vld [vmem:[#allocation12 + $0x3c] sm:$0xf]
        %v2012 = vld [vmem:[#allocation12 + $0x40] sm:$0xf]
        %v2013 = vld [vmem:[#allocation12 + $0x44] sm:$0xf]
        %v2014 = vld [vmem:[#allocation12 + $0x48] sm:$0xf]
        %v2015 = vld [vmem:[#allocation12 + $0x4c] sm:$0xf]
        %v2016 = vld [vmem:[#allocation12 + $0x50] sm:$0xf]
        %v2017 = vld [vmem:[#allocation12 + $0x54] sm:$0xf]
        %v2018 = vld [vmem:[#allocation12 + $0x58] sm:$0xf]
        %v2019 = vld [vmem:[#allocation12 + $0x5c] sm:$0xf]
        %v2020 = vld [vmem:[#allocation12 + $0x60] sm:$0xf]
        %v2021 = vld [vmem:[#allocation12 + $0x64] sm:$0xf]
        %v2022 = vld [vmem:[#allocation12 + $0x68] sm:$0xf]
        %v2023 = vld [vmem:[#allocation12 + $0x6c] sm:$0xf]
        %v2024 = vld [vmem:[#allocation12 + $0x70] sm:$0xf]
        %v2025 = vld [vmem:[#allocation12 + $0x74] sm:$0xf]
        %v2026 = vld [vmem:[#allocation12 + $0x78] sm:$0xf]
        %v2027 = vld [vmem:[#allocation12 + $0x7c] sm:$0xf]
        %v2028 = vld [vmem:[#allocation12 + $0x80] sm:$0xf]
        %v2029 = vld [vmem:[#allocation12 + $0x84] sm:$0xf]
        %v2030 = vld [vmem:[#allocation12 + $0x88] sm:$0xf]
        %v2031 = vld [vmem:[#allocation12 + $0x8c] sm:$0xf]
        %v2032 = vld [vmem:[#allocation12 + $0x90] sm:$0xf]
        %v2033 = vld [vmem:[#allocation12 + $0x94] sm:$0xf]
        %v2034 = vld [vmem:[#allocation12 + $0x98] sm:$0xf]
        %v2035 = vld [vmem:[#allocation12 + $0x9c] sm:$0xf]
        %v2036 = vld [vmem:[#allocation12 + $0xa0] sm:$0xf]
        %v2037 = vld [vmem:[#allocation12 + $0xa4] sm:$0xf]
        %v2038 = vld [vmem:[#allocation12 + $0xa8] sm:$0xf]
        %v2039 = vld [vmem:[#allocation12 + $0xac] sm:$0xf]
        %v2040 = vld [vmem:[#allocation12 + $0xb0] sm:$0xf]
        %v2041 = vld [vmem:[#allocation12 + $0xb4] sm:$0xf]
        %v2042 = vld [vmem:[#allocation12 + $0xb8] sm:$0xf]
        %v2043 = vld [vmem:[#allocation12 + $0xbc] sm:$0xf]
        %v2044 = vld [vmem:[#allocation12 + $0xc0] sm:$0xf]
        %v2045 = vld [vmem:[#allocation12 + $0xc4] sm:$0xf]
        %v2046 = vld [vmem:[#allocation12 + $0xc8] sm:$0xf]
        %v2047 = vld [vmem:[#allocation12 + $0xcc] sm:$0xf]
        %v2048 = vld [vmem:[#allocation12 + $0xd0] sm:$0xf]
        %v2049 = vld [vmem:[#allocation12 + $0xd4] sm:$0xf]
        %v2050 = vld [vmem:[#allocation12 + $0xd8] sm:$0xf]
        %v2051 = vld [vmem:[#allocation12 + $0xdc] sm:$0xf]
        %v2052 = vld [vmem:[#allocation12 + $0xe0] sm:$0xf]
        %v2053 = vld [vmem:[#allocation12 + $0xe4] sm:$0xf]
        %v2054 = vld [vmem:[#allocation12 + $0xe8] sm:$0xf]
        %v2055 = vld [vmem:[#allocation12 + $0xec] sm:$0xf]
        %v2056 = vld [vmem:[#allocation12 + $0xf0] sm:$0xf]
        %v2057 = vld [vmem:[#allocation12 + $0xf4] sm:$0xf]
        %v2058 = vld [vmem:[#allocation12 + $0xf8] sm:$0xf]
        %v2059 = vld [vmem:[#allocation12 + $0xfc] sm:$0xf]
        %v2060 = vld [vmem:[%s8] sm:$0x1]
        %v2062 = vlaneseq
        %v2063 = vshrl.u32 %v2062, 7
        %v2064 = vsub.s32 0, %v2063
        %v2065 = vrot.slane %v2060, %v2064
        %v2131 = vunpack.c.l.b16 %v1996
        %v2132 = vunpack.c.l.b16 %v1997
        %v2133 = vunpack.c.l.b16 %v1998
        %v2134 = vunpack.c.l.b16 %v1999
        %v2135 = vunpack.c.l.b16 %v2000
        %v2136 = vunpack.c.l.b16 %v2001
        %v2137 = vunpack.c.l.b16 %v2002
        %v2138 = vunpack.c.l.b16 %v2003
        %v2139 = vunpack.c.l.b16 %v2004
        %v2140 = vunpack.c.l.b16 %v2005
        %v2141 = vunpack.c.l.b16 %v2006
        %v2142 = vunpack.c.l.b16 %v2007
        %v2143 = vunpack.c.l.b16 %v2008
        %v2144 = vunpack.c.l.b16 %v2009
        %v2145 = vunpack.c.l.b16 %v2010
        %v2146 = vunpack.c.l.b16 %v2011
        %v2147 = vunpack.c.l.b16 %v2012
        %v2148 = vunpack.c.l.b16 %v2013
        %v2149 = vunpack.c.l.b16 %v2014
        %v2150 = vunpack.c.l.b16 %v2015
        %v2151 = vunpack.c.l.b16 %v2016
        %v2152 = vunpack.c.l.b16 %v2017
        %v2153 = vunpack.c.l.b16 %v2018
        %v2154 = vunpack.c.l.b16 %v2019
        %v2155 = vunpack.c.l.b16 %v2020
        %v2156 = vunpack.c.l.b16 %v2021
        %v2157 = vunpack.c.l.b16 %v2022
        %v2158 = vunpack.c.l.b16 %v2023
        %v2159 = vunpack.c.l.b16 %v2024
        %v2160 = vunpack.c.l.b16 %v2025
        %v2161 = vunpack.c.l.b16 %v2026
        %v2162 = vunpack.c.l.b16 %v2027
        %v2163 = vunpack.c.l.b16 %v2028
        %v2164 = vunpack.c.l.b16 %v2029
        %v2165 = vunpack.c.l.b16 %v2030
        %v2166 = vunpack.c.l.b16 %v2031
        %v2167 = vunpack.c.l.b16 %v2032
        %v2168 = vunpack.c.l.b16 %v2033
        %v2169 = vunpack.c.l.b16 %v2034
        %v2170 = vunpack.c.l.b16 %v2035
        %v2171 = vunpack.c.l.b16 %v2036
        %v2172 = vunpack.c.l.b16 %v2037
        %v2173 = vunpack.c.l.b16 %v2038
        %v2174 = vunpack.c.l.b16 %v2039
        %v2175 = vunpack.c.l.b16 %v2040
        %v2176 = vunpack.c.l.b16 %v2041
        %v2177 = vunpack.c.l.b16 %v2042
        %v2178 = vunpack.c.l.b16 %v2043
        %v2179 = vunpack.c.l.b16 %v2044
        %v2180 = vunpack.c.l.b16 %v2045
        %v2181 = vunpack.c.l.b16 %v2046
        %v2182 = vunpack.c.l.b16 %v2047
        %v2183 = vunpack.c.l.b16 %v2048
        %v2184 = vunpack.c.l.b16 %v2049
        %v2185 = vunpack.c.l.b16 %v2050
        %v2186 = vunpack.c.l.b16 %v2051
        %v2187 = vunpack.c.l.b16 %v2052
        %v2188 = vunpack.c.l.b16 %v2053
        %v2189 = vunpack.c.l.b16 %v2054
        %v2190 = vunpack.c.l.b16 %v2055
        %v2191 = vunpack.c.l.b16 %v2056
        %v2192 = vunpack.c.l.b16 %v2057
        %v2193 = vunpack.c.l.b16 %v2058
        %v2194 = vunpack.c.l.b16 %v2059
        %v2195 = vpack.c.b16 %v2132, %v2131
        %v2196 = vpack.c.b16 %v2134, %v2133
        %v2197 = vpack.c.b16 %v2136, %v2135
        %v2198 = vpack.c.b16 %v2138, %v2137
        %v2199 = vpack.c.b16 %v2140, %v2139
        %v2200 = vpack.c.b16 %v2142, %v2141
        %v2201 = vpack.c.b16 %v2144, %v2143
        %v2202 = vpack.c.b16 %v2146, %v2145
        %v2203 = vpack.c.b16 %v2148, %v2147
        %v2204 = vpack.c.b16 %v2150, %v2149
        %v2205 = vpack.c.b16 %v2152, %v2151
        %v2206 = vpack.c.b16 %v2154, %v2153
        %v2207 = vpack.c.b16 %v2156, %v2155
        %v2208 = vpack.c.b16 %v2158, %v2157
        %v2209 = vpack.c.b16 %v2160, %v2159
        %v2210 = vpack.c.b16 %v2162, %v2161
        %v2211 = vpack.c.b16 %v2164, %v2163
        %v2212 = vpack.c.b16 %v2166, %v2165
        %v2213 = vpack.c.b16 %v2168, %v2167
        %v2214 = vpack.c.b16 %v2170, %v2169
        %v2215 = vpack.c.b16 %v2172, %v2171
        %v2216 = vpack.c.b16 %v2174, %v2173
        %v2217 = vpack.c.b16 %v2176, %v2175
        %v2218 = vpack.c.b16 %v2178, %v2177
        %v2219 = vpack.c.b16 %v2180, %v2179
        %v2220 = vpack.c.b16 %v2182, %v2181
        %v2221 = vpack.c.b16 %v2184, %v2183
        %v2222 = vpack.c.b16 %v2186, %v2185
        %v2223 = vpack.c.b16 %v2188, %v2187
        %v2224 = vpack.c.b16 %v2190, %v2189
        %v2225 = vpack.c.b16 %v2192, %v2191
        %v2226 = vpack.c.b16 %v2194, %v2193
        %2259 = vmatprep.subr.bf16.mxu0 0
        %2260 = vmatpush1.bf16.msra.mxu0 %v2195
        %2261 = vmatprep.subr.bf16.mxu0 0
        %2262 = vmatpush1.bf16.msra.mxu0 %v2196
        %2263 = vmatprep.subr.bf16.mxu0 0
        %2264 = vmatpush1.bf16.msra.mxu0 %v2197
        %2265 = vmatprep.subr.bf16.mxu0 0
        %2266 = vmatpush1.bf16.msra.mxu0 %v2198
        %2267 = vmatprep.subr.bf16.mxu0 0
        %2268 = vmatpush1.bf16.msra.mxu0 %v2199
        %2269 = vmatprep.subr.bf16.mxu0 0
        %2270 = vmatpush1.bf16.msra.mxu0 %v2200
        %2271 = vmatprep.subr.bf16.mxu0 0
        %2272 = vmatpush1.bf16.msra.mxu0 %v2201
        %2273 = vmatprep.subr.bf16.mxu0 0
        %2274 = vmatpush1.bf16.msra.mxu0 %v2202
        %2275 = vmatprep.subr.bf16.mxu0 0
        %2276 = vmatpush1.bf16.msra.mxu0 %v2203
        %2277 = vmatprep.subr.bf16.mxu0 0
        %2278 = vmatpush1.bf16.msra.mxu0 %v2204
        %2279 = vmatprep.subr.bf16.mxu0 0
        %2280 = vmatpush1.bf16.msra.mxu0 %v2205
        %2281 = vmatprep.subr.bf16.mxu0 0
        %2282 = vmatpush1.bf16.msra.mxu0 %v2206
        %2283 = vmatprep.subr.bf16.mxu0 0
        %2284 = vmatpush1.bf16.msra.mxu0 %v2207
        %2285 = vmatprep.subr.bf16.mxu0 0
        %2286 = vmatpush1.bf16.msra.mxu0 %v2208
        %2287 = vmatprep.subr.bf16.mxu0 0
        %2288 = vmatpush1.bf16.msra.mxu0 %v2209
        %2289 = vmatprep.subr.bf16.mxu0 0
        %2290 = vmatpush1.bf16.msra.mxu0 %v2210
        %2291 = vmatprep.mubr.bf16.mxu0 %v1993
        %2292 = vmatmul.mubr.bf16.gmra.mrb[0].mxu0 %v1992
        %v2293 = vpop.f32.mrb[0].mxu0
        %v2294 = vadd.f32 %v2065, %v2293
        %v2295 = vpop.f32.mrb[0].mxu0
        %v2296 = vpop.f32.mrb[0].mxu0
        %v2297 = vpop.f32.mrb[0].mxu0
        %2298 = vdwg.mxu0
        %2299 = vmatprep.subr.bf16.mxu0 0
        %2300 = vmatpush1.bf16.msra.mxu0 %v2211
        %2301 = vmatprep.subr.bf16.mxu0 0
        %2302 = vmatpush1.bf16.msra.mxu0 %v2212
        %2303 = vmatprep.subr.bf16.mxu0 0
        %2304 = vmatpush1.bf16.msra.mxu0 %v2213
        %2305 = vmatprep.subr.bf16.mxu0 0
        %2306 = vmatpush1.bf16.msra.mxu0 %v2214
        %2307 = vmatprep.subr.bf16.mxu0 0
        %2308 = vmatpush1.bf16.msra.mxu0 %v2215
        %2309 = vmatprep.subr.bf16.mxu0 0
        %2310 = vmatpush1.bf16.msra.mxu0 %v2216
        %2311 = vmatprep.subr.bf16.mxu0 0
        %2312 = vmatpush1.bf16.msra.mxu0 %v2217
        %2313 = vmatprep.subr.bf16.mxu0 0
        %2314 = vmatpush1.bf16.msra.mxu0 %v2218
        %2315 = vmatprep.subr.bf16.mxu0 0
        %2316 = vmatpush1.bf16.msra.mxu0 %v2219
        %2317 = vmatprep.subr.bf16.mxu0 0
        %2318 = vmatpush1.bf16.msra.mxu0 %v2220
        %2319 = vmatprep.subr.bf16.mxu0 0
        %2320 = vmatpush1.bf16.msra.mxu0 %v2221
        %2321 = vmatprep.subr.bf16.mxu0 0
        %2322 = vmatpush1.bf16.msra.mxu0 %v2222
        %2323 = vmatprep.subr.bf16.mxu0 0
        %2324 = vmatpush1.bf16.msra.mxu0 %v2223
        %2325 = vmatprep.subr.bf16.mxu0 0
        %2326 = vmatpush1.bf16.msra.mxu0 %v2224
        %2327 = vmatprep.subr.bf16.mxu0 0
        %2328 = vmatpush1.bf16.msra.mxu0 %v2225
        %2329 = vmatprep.subr.bf16.mxu0 0
        %2330 = vmatpush1.bf16.msra.mxu0 %v2226
        %2331 = vmatprep.mubr.bf16.mxu0 %v1995
        %2332 = vmatmul.mubr.bf16.gmra.mrb[0].mxu0 %v1994
        %v2333 = vpop.f32.mrb[0].mxu0
        %v2334 = vadd.f32 %v2294, %v2333
        %v2335 = vpop.f32.mrb[0].mxu0
        %v2336 = vpop.f32.mrb[0].mxu0
        %v2337 = vpop.f32.mrb[0].mxu0
        %2338 = vdwg.mxu0
        %v2339 = vlaneseq
        %v2340 = vand.u32 %v2339, 127
        %vm2341 = vcmp.lt.s32.totalorder %v2340, 32
        %v2342 = vsel %vm2341, 1, 0
        %v2343 = vcvt.s32.f32 %v2342
        %v2344 = vadd.f32 %v1288, %v2334
        %v2345 = vld [vmem:[%s13] sm:$0x1]
        %v2346 = vld [vmem:[%s14] sm:$0x1]
        %2347 = vadd.xlane.f32.xlu0 %v2344
        %v2348 = vpop.xlane.xlu0 %2347
        %v2349 = vmul.f32 %v2348, 0.03125
        %v2350 = vsub.f32 %v2344, %v2349
        %v2351 = vmul.f32 %v2350, %v2343
        %v2352 = vmul.f32 %v2351, %v2351
        %2353 = vadd.xlane.f32.xlu0 %v2352
        %v2354 = vpop.xlane.xlu0 %2353
        %v2355 = vmul.f32 %v2354, 0.03125
        %v2356 = vadd.f32 %v2355, 1e-05
        %v2357 = vrsqrt.pop %v2356
        %v2358 = vmul.f32 %v2351, %v2357
        %v2360 = vlaneseq
        %v2361 = vshrl.u32 %v2360, 7
        %v2362 = vsub.s32 0, %v2361
        %v2363 = vrot.slane %v2345, %v2362
        %v2365 = vmul.f32 %v2358, %v2363
        %v2367 = vlaneseq
        %v2368 = vshrl.u32 %v2367, 7
        %v2369 = vsub.s32 0, %v2368
        %v2370 = vrot.slane %v2346, %v2369
        %v2372 = vadd.f32 %v2365, %v2370
        %v2373 = vpack.c.bf16 %v2372, %v2372
        %v2374 = vld [vmem:[#allocation13] sm:$0xf]
        %v2375 = vld [vmem:[#allocation13 + $0x4] sm:$0xf]
        %v2376 = vld [vmem:[#allocation13 + $0x8] sm:$0xf]
        %v2377 = vld [vmem:[#allocation13 + $0xc] sm:$0xf]
        %v2378 = vld [vmem:[#allocation13 + $0x10] sm:$0xf]
        %v2379 = vld [vmem:[#allocation13 + $0x14] sm:$0xf]
        %v2380 = vld [vmem:[#allocation13 + $0x18] sm:$0xf]
        %v2381 = vld [vmem:[#allocation13 + $0x1c] sm:$0xf]
        %v2382 = vld [vmem:[#allocation13 + $0x20] sm:$0xf]
        %v2383 = vld [vmem:[#allocation13 + $0x24] sm:$0xf]
        %v2384 = vld [vmem:[#allocation13 + $0x28] sm:$0xf]
        %v2385 = vld [vmem:[#allocation13 + $0x2c] sm:$0xf]
        %v2386 = vld [vmem:[#allocation13 + $0x30] sm:$0xf]
        %v2387 = vld [vmem:[#allocation13 + $0x34] sm:$0xf]
        %v2388 = vld [vmem:[#allocation13 + $0x38] sm:$0xf]
        %v2389 = vld [vmem:[#allocation13 + $0x3c] sm:$0xf]
        %v2390 = vld [vmem:[%s10] sm:$0x1]
        %v2392 = vlaneseq
        %v2393 = vshrl.u32 %v2392, 7
        %v2394 = vsub.s32 0, %v2393
        %v2395 = vrot.slane %v2390, %v2394
        %v2413 = vunpack.c.l.b16 %v2374
        %v2414 = vunpack.c.l.b16 %v2375
        %v2415 = vunpack.c.l.b16 %v2376
        %v2416 = vunpack.c.l.b16 %v2377
        %v2417 = vunpack.c.l.b16 %v2378
        %v2418 = vunpack.c.l.b16 %v2379
        %v2419 = vunpack.c.l.b16 %v2380
        %v2420 = vunpack.c.l.b16 %v2381
        %v2421 = vunpack.c.l.b16 %v2382
        %v2422 = vunpack.c.l.b16 %v2383
        %v2423 = vunpack.c.l.b16 %v2384
        %v2424 = vunpack.c.l.b16 %v2385
        %v2425 = vunpack.c.l.b16 %v2386
        %v2426 = vunpack.c.l.b16 %v2387
        %v2427 = vunpack.c.l.b16 %v2388
        %v2428 = vunpack.c.l.b16 %v2389
        %v2429 = vpack.c.b16 %v2414, %v2413
        %v2430 = vpack.c.b16 %v2416, %v2415
        %v2431 = vpack.c.b16 %v2418, %v2417
        %v2432 = vpack.c.b16 %v2420, %v2419
        %v2433 = vpack.c.b16 %v2422, %v2421
        %v2434 = vpack.c.b16 %v2424, %v2423
        %v2435 = vpack.c.b16 %v2426, %v2425
        %v2436 = vpack.c.b16 %v2428, %v2427
        %2445 = vmatprep.subr.bf16.mxu0 0
        %2446 = vmatpush1.bf16.msra.mxu0 %v2429
        %2447 = vmatprep.subr.bf16.mxu0 0
        %2448 = vmatpush1.bf16.msra.mxu0 %v2430
        %2449 = vmatprep.subr.bf16.mxu0 0
        %2450 = vmatpush1.bf16.msra.mxu0 %v2431
        %2451 = vmatprep.subr.bf16.mxu0 0
        %2452 = vmatpush1.bf16.msra.mxu0 %v2432
        %2453 = vmatprep.subr.bf16.mxu0 0
        %2454 = vmatpush1.bf16.msra.mxu0 %v2433
        %2455 = vmatprep.subr.bf16.mxu0 0
        %2456 = vmatpush1.bf16.msra.mxu0 %v2434
        %2457 = vmatprep.subr.bf16.mxu0 0
        %2458 = vmatpush1.bf16.msra.mxu0 %v2435
        %2459 = vmatprep.subr.bf16.mxu0 0
        %2460 = vmatpush1.bf16.msra.mxu0 %v2436
        %2461 = vmatprep.subr.bf16.mxu0 0
        %2462 = vmatpush1.bf16.msra.mxu0 0
        %2463 = vmatprep.subr.bf16.mxu0 0
        %2464 = vmatpush1.bf16.msra.mxu0 0
        %2465 = vmatprep.subr.bf16.mxu0 0
        %2466 = vmatpush1.bf16.msra.mxu0 0
        %2467 = vmatprep.subr.bf16.mxu0 0
        %2468 = vmatpush1.bf16.msra.mxu0 0
        %2469 = vmatprep.subr.bf16.mxu0 0
        %2470 = vmatpush1.bf16.msra.mxu0 0
        %2471 = vmatprep.subr.bf16.mxu0 0
        %2472 = vmatpush1.bf16.msra.mxu0 0
        %2473 = vmatprep.subr.bf16.mxu0 0
        %2474 = vmatpush1.bf16.msra.mxu0 0
        %2475 = vmatprep.subr.bf16.mxu0 0
        %2476 = vmatpush1.bf16.msra.mxu0 0
        %2477 = vmatprep.mubr.bf16.mxu0 0
        %2478 = vmatmul.mubr.bf16.gmra.mrb[0].mxu0 %v2373
        %v2479 = vpop.f32.mrb[0].mxu0
        %v2480 = vadd.f32 %v2395, %v2479
        %v2481 = vpop.f32.mrb[0].mxu0
        %v2482 = vpop.f32.mrb[0].mxu0
        %v2483 = vpop.f32.mrb[0].mxu0
        %2484 = vdwg.mxu0
        %v2485 = vmax.f32 %v2480, 0.0
        %v2486 = vpack.c.bf16 %v2485, %v2485
        %v2487 = vld [vmem:[#allocation15] sm:$0xf]
        %v2488 = vld [vmem:[#allocation15 + $0x4] sm:$0xf]
        %v2489 = vld [vmem:[#allocation15 + $0x8] sm:$0xf]
        %v2490 = vld [vmem:[#allocation15 + $0xc] sm:$0xf]
        %v2491 = vld [vmem:[#allocation15 + $0x10] sm:$0xf]
        %v2492 = vld [vmem:[#allocation15 + $0x14] sm:$0xf]
        %v2493 = vld [vmem:[#allocation15 + $0x18] sm:$0xf]
        %v2494 = vld [vmem:[#allocation15 + $0x1c] sm:$0xf]
        %v2495 = vld [vmem:[#allocation15 + $0x20] sm:$0xf]
        %v2496 = vld [vmem:[#allocation15 + $0x24] sm:$0xf]
        %v2497 = vld [vmem:[#allocation15 + $0x28] sm:$0xf]
        %v2498 = vld [vmem:[#allocation15 + $0x2c] sm:$0xf]
        %v2499 = vld [vmem:[#allocation15 + $0x30] sm:$0xf]
        %v2500 = vld [vmem:[#allocation15 + $0x34] sm:$0xf]
        %v2501 = vld [vmem:[#allocation15 + $0x38] sm:$0xf]
        %v2502 = vld [vmem:[#allocation15 + $0x3c] sm:$0xf]
        %v2503 = vld [vmem:[%s12] sm:$0x1]
        %v2505 = vlaneseq
        %v2506 = vshrl.u32 %v2505, 7
        %v2507 = vsub.s32 0, %v2506
        %v2508 = vrot.slane %v2503, %v2507
        %v2526 = vunpack.c.l.b16 %v2487
        %v2527 = vunpack.c.l.b16 %v2488
        %v2528 = vunpack.c.l.b16 %v2489
        %v2529 = vunpack.c.l.b16 %v2490
        %v2530 = vunpack.c.l.b16 %v2491
        %v2531 = vunpack.c.l.b16 %v2492
        %v2532 = vunpack.c.l.b16 %v2493
        %v2533 = vunpack.c.l.b16 %v2494
        %v2534 = vunpack.c.l.b16 %v2495
        %v2535 = vunpack.c.l.b16 %v2496
        %v2536 = vunpack.c.l.b16 %v2497
        %v2537 = vunpack.c.l.b16 %v2498
        %v2538 = vunpack.c.l.b16 %v2499
        %v2539 = vunpack.c.l.b16 %v2500
        %v2540 = vunpack.c.l.b16 %v2501
        %v2541 = vunpack.c.l.b16 %v2502
        %v2542 = vpack.c.b16 %v2527, %v2526
        %v2543 = vpack.c.b16 %v2529, %v2528
        %v2544 = vpack.c.b16 %v2531, %v2530
        %v2545 = vpack.c.b16 %v2533, %v2532
        %v2546 = vpack.c.b16 %v2535, %v2534
        %v2547 = vpack.c.b16 %v2537, %v2536
        %v2548 = vpack.c.b16 %v2539, %v2538
        %v2549 = vpack.c.b16 %v2541, %v2540
        %2558 = vmatprep.subr.bf16.mxu0 0
        %2559 = vmatpush1.bf16.msra.mxu0 %v2542
        %2560 = vmatprep.subr.bf16.mxu0 0
        %2561 = vmatpush1.bf16.msra.mxu0 %v2543
        %2562 = vmatprep.subr.bf16.mxu0 0
        %2563 = vmatpush1.bf16.msra.mxu0 %v2544
        %2564 = vmatprep.subr.bf16.mxu0 0
        %2565 = vmatpush1.bf16.msra.mxu0 %v2545
        %2566 = vmatprep.subr.bf16.mxu0 0
        %2567 = vmatpush1.bf16.msra.mxu0 %v2546
        %2568 = vmatprep.subr.bf16.mxu0 0
        %2569 = vmatpush1.bf16.msra.mxu0 %v2547
        %2570 = vmatprep.subr.bf16.mxu0 0
        %2571 = vmatpush1.bf16.msra.mxu0 %v2548
        %2572 = vmatprep.subr.bf16.mxu0 0
        %2573 = vmatpush1.bf16.msra.mxu0 %v2549
        %2574 = vmatprep.subr.bf16.mxu0 0
        %2575 = vmatpush1.bf16.msra.mxu0 0
        %2576 = vmatprep.subr.bf16.mxu0 0
        %2577 = vmatpush1.bf16.msra.mxu0 0
        %2578 = vmatprep.subr.bf16.mxu0 0
        %2579 = vmatpush1.bf16.msra.mxu0 0
        %2580 = vmatprep.subr.bf16.mxu0 0
        %2581 = vmatpush1.bf16.msra.mxu0 0
        %2582 = vmatprep.subr.bf16.mxu0 0
        %2583 = vmatpush1.bf16.msra.mxu0 0
        %2584 = vmatprep.subr.bf16.mxu0 0
        %2585 = vmatpush1.bf16.msra.mxu0 0
        %2586 = vmatprep.subr.bf16.mxu0 0
        %2587 = vmatpush1.bf16.msra.mxu0 0
        %2588 = vmatprep.subr.bf16.mxu0 0
        %2589 = vmatpush1.bf16.msra.mxu0 0
        %2590 = vmatprep.mubr.bf16.mxu0 0
        %2591 = vmatmul.mubr.bf16.gmra.mrb[0].mxu0 %v2486
        %v2592 = vpop.f32.mrb[0].mxu0
        %v2593 = vadd.f32 %v2508, %v2592
        %v2594 = vpop.f32.mrb[0].mxu0
        %v2595 = vpop.f32.mrb[0].mxu0
        %v2596 = vpop.f32.mrb[0].mxu0
        %2597 = vdwg.mxu0
        %v2598 = vadd.f32 %v2372, %v2593
        %v2599 = vld [vmem:[%s15] sm:$0x1]
        %v2600 = vld [vmem:[%s16] sm:$0x1]
        %2601 = vadd.xlane.f32.xlu0 %v2598
        %v2602 = vpop.xlane.xlu0 %2601
        %v2603 = vmul.f32 %v2602, 0.03125
        %v2604 = vsub.f32 %v2598, %v2603
        %v2605 = vmul.f32 %v2604, %v2343
        %v2606 = vmul.f32 %v2605, %v2605
        %2607 = vadd.xlane.f32.xlu0 %v2606
        %v2608 = vpop.xlane.xlu0 %2607
        %v2609 = vmul.f32 %v2608, 0.03125
        %v2610 = vadd.f32 %v2609, 1e-05
        %v2611 = vrsqrt.pop %v2610
        %v2612 = vmul.f32 %v2605, %v2611
        %v2614 = vlaneseq
        %v2615 = vshrl.u32 %v2614, 7
        %v2616 = vsub.s32 0, %v2615
        %v2617 = vrot.slane %v2599, %v2616
        %v2619 = vmul.f32 %v2612, %v2617
        %v2621 = vlaneseq
        %v2622 = vshrl.u32 %v2621, 7
        %v2623 = vsub.s32 0, %v2622
        %v2624 = vrot.slane %v2600, %v2623
        %v2626 = vadd.f32 %v2619, %v2624
        %2627 = vst [vmem:[%s664] sm:$0xff] %v2626
        %s2628 = sand.u32 %s421, 1
        %s2629 = scalar_lea.sflag [#allocation6], %s2628
        %s2630 = sand.u32 %s421, 1
        %s2631 = smul.addr %s2630, 8
        %s2632 = scalar_lea.vmem [#allocation16], %s2631
        // Predicated region
        $region121: #{tpu_custom_call.1} parent=87 // pred_check
          %p2633 = pneg %p431
        $region122: #{tpu_custom_call.1} parent=87 // pred_check_branch
          %2635 = sbr.rel (%p2633) target = $region124
        $region123: #{tpu_custom_call.1} parent=87 // pred_region
          %s2637 = ssub.s32 128, 128
          %2638 = vsyncadd %s2629, %s2637
          %s2639 = sadd.s32 %s42, %s41
          %s2640 = smul.addr %s2639, 128
          %s2641 = scalar_lea.hbm %s17, %s2640
          %s2643 = sshll.u32 %s2632, 4
          %s2644 = int_to_ptr.vmem [resolvable:$true] %s2643
          %2646 = dma.vmem_to_hbm [thread:$0]  %s2644, 128, %s2641, %s2629
        $region124: #{tpu_custom_call.1} parent=87 // pred_fallthru
          _
      $region88: #{tpu_custom_call.1} parent=5 // pred_fallthru
        _
      %p2647 = scmp.le.s32.totalorder 2, %s32
      // Predicated region
      $region125: #{tpu_custom_call.1} parent=5 // pred_check
        %p2648 = pneg %p2647
      $region126: #{tpu_custom_call.1} parent=5 // pred_check_branch
        %2650 = sbr.rel (%p2648) target = $region128
      $region127: #{tpu_custom_call.1} parent=5 // pred_region
        %s2651 = ssub.s32 %s32, 2
        // Predicated region
        $region129: #{tpu_custom_call.1} parent=127 // pred_check
          %p2652 = pneg %p437
        $region130: #{tpu_custom_call.1} parent=127 // pred_check_branch
          %2654 = sbr.rel (%p2652) target = $region132
        $region131: #{tpu_custom_call.1} parent=127 // pred_region
          %s2655 = sand.u32 %s422, 1
          %s2656 = scalar_lea.sflag [#allocation6], %s2655
          %s2657 = sand.u32 %s422, 1
          %s2658 = smul.addr %s2657, 8
          %s2659 = scalar_lea.vmem [#allocation16], %s2658
          %2660 = dma.done %s2656, 128
        $region132: #{tpu_custom_call.1} parent=127 // pred_fallthru
          _
      $region128: #{tpu_custom_call.1} parent=5 // pred_fallthru
        _
    $region6: #{tpu_custom_call.1} parent=1 // loop_footer
      %s36 = sadd.s32 1, %s32
    $region7: #{tpu_custom_call.1} parent=1 // loop_footer_branch
      %31 = sbr.rel target = $region3
    $region8: #{tpu_custom_call.1} parent=1 // loop_exit
      _
    %2661 = vsyncpa [#allocation5], 1
    %s2662 = scalar_lea.sflag [#allocation5], 1
    %2663 = vsyncpa %s2662, 1
    %2664 = vsyncpa [#allocation8], 1
    %2665 = vsyncpa [#allocation11], 1
    %2666 = vsyncpa [#allocation14], 1
    %2667 = vsyncpa [#allocation6], 1
    %s2668 = scalar_lea.sflag [#allocation6], 1
    %2669 = vsyncpa %s2668, 1

</llo_original>
